<compile_context>
chip_gen: v7x
topology: tpu7x:2x2x1
jax: 0.10.0
libtpu: 0.0.40
codegen_flags: <defaults>
</compile_context>

<pallas_src>
import functools

import jax
import jax.numpy as jnp
from jax.experimental import pallas as pl
from jax.experimental.pallas import tpu as pltpu

IMAGENET_MEAN = (0.485, 0.456, 0.406)
IMAGENET_STD = (0.229, 0.224, 0.225)


def _round_up(v, m):
    return ((v + m - 1) // m) * m


def _choose_bb(B, T):
    """Sequences per grid block: want bb*T rows to be a multiple of 8."""
    for bb in range(1, B + 1):
        if B % bb == 0 and (bb * T) % 8 == 0:
            return bb
    return B  # ragged fallback: still correct, just masked sublane ops


# ---------------------------------------------------------------------------
# Fused kernel: folded feature projection + 3 dilated Conv1d+ReLU layers
# (im2col matmuls via sublane rolls) + FC head.
# One grid step handles bb whole sequences (rows = bb*T, b-major / t-minor).
#   pooled: (rows, C)   f32
#   wf:  (C, Dp)  bf16   bf:  (1, Dp)  f32    folded normalize + projection
#   wK:  (5*Dp, Dp) bf16 bK:  (1, Dp)  f32    dilated conv layers (im2col)
#   wfc: (Dp, NCp) bf16  bfc: (1, NCp) f32    FC head (lane padded)
#   o:   (rows, NCp) f32                       lane-dense logits
# ---------------------------------------------------------------------------
def _fused_kernel(pooled_ref, wf_ref, bf_ref,
                  w1_ref, b1_ref, w2_ref, b2_ref, w3_ref, b3_ref,
                  wfc_ref, bfc_ref, o_ref, *, T):
    rows = pooled_ref.shape[0]                       # static

    # Feature stub projection (normalize + standardize folded into wf/bf).
    h = jnp.dot(pooled_ref[...].astype(jnp.bfloat16), wf_ref[...],
                preferred_element_type=jnp.float32) + bf_ref[...]   # (rows, Dp)

    # Frame index within each sequence (rows are b-major, t-minor).
    t_idx = jax.lax.broadcasted_iota(jnp.int32, (rows, 1), 0) % T

    def dilated_conv_relu(h, w_ref, b_ref, dil):
        # PyTorch Conv1d(D, D, kernel_size=5, padding=2*dil, dilation=dil):
        #   out[t] = b + sum_k  h[t + (k - 2) * dil] @ w[k]   (zero padded)
        cols = []
        for k in range(5):                           # static taps -> im2col
            off = (k - 2) * dil
            if off == 0:
                cols.append(h)
                continue
            sh = (-off) % rows                       # static, non-negative
            rolled = h if sh == 0 else pltpu.roll(h, sh, axis=0)
            valid = (t_idx + off >= 0) & (t_idx + off < T)
            cols.append(jnp.where(valid, rolled, 0.0))
        hcat = jnp.concatenate(cols, axis=1)         # (rows, 5*Dp) f32
        out = jnp.dot(hcat.astype(jnp.bfloat16), w_ref[...],
                      preferred_element_type=jnp.float32) + b_ref[...]
        return jnp.maximum(out, 0.0)                 # ReLU in f32

    h = dilated_conv_relu(h, w1_ref, b1_ref, 1)
    h = dilated_conv_relu(h, w2_ref, b2_ref, 2)
    h = dilated_conv_relu(h, w3_ref, b3_ref, 4)

    # FC head (dropout = identity in eval); lane-dense (rows, 128k) store.
    o_ref[...] = jnp.dot(h.astype(jnp.bfloat16), wfc_ref[...],
                         preferred_element_type=jnp.float32) + bfc_ref[...]


# ---------------------------------------------------------------------------
# Wrapper
# ---------------------------------------------------------------------------
def rgb_classifier_forward(x, params):
    B, T, C, H, W = x.shape
    D = params["w_feat"].shape[1]
    NC = params["w_fc"].shape[1]
    DP = _round_up(D, 128)
    NCP = _round_up(NC, 128)

    std = jnp.asarray(IMAGENET_STD, jnp.float32)
    mean = jnp.asarray(IMAGENET_MEAN, jnp.float32)
    scale = 1.0 / (255.0 * std)                      # (C,)
    shift = -(mean / std)                            # (C,)

    # Feature stub, stage 1: global average pool over H*W as one XLA reduce
    # (HBM-bandwidth bound, fully pipelined by XLA; accepts f32/bf16/uint8
    # frames with f32 accumulation).  Kernel input shrinks to (B*T, C).
    pooled = jnp.mean(x.reshape(B * T, C, H * W), axis=2, dtype=jnp.float32)

    # Fold /255 + ImageNet standardization into the projection weight/bias:
    #   feat = pooled_raw @ (diag(scale) @ w) + (shift @ w + b)
    w_feat = params["w_feat"].astype(jnp.float32)
    b_feat = params["b_feat"].astype(jnp.float32)
    w_fold = scale[:, None] * w_feat                             # (C, D)
    b_fold = shift[None, :] @ w_feat + b_feat                    # (1, D)
    w_fold = jnp.pad(w_fold, ((0, 0), (0, DP - D))).astype(jnp.bfloat16)
    b_fold = jnp.pad(b_fold, ((0, 0), (0, DP - D)))              # f32 bias

    def pad_tcn(w, b):
        wp = jnp.pad(w.astype(jnp.float32),
                     ((0, 0), (0, DP - D), (0, DP - D)))         # (5, Dp, Dp)
        wp = wp.reshape(5 * DP, DP).astype(jnp.bfloat16)         # im2col layout
        bp = jnp.pad(b.astype(jnp.float32), ((0, 0), (0, DP - D)))
        return wp, bp

    w1, b1 = pad_tcn(params["w_tcn1"], params["b_tcn1"])
    w2, b2 = pad_tcn(params["w_tcn2"], params["b_tcn2"])
    w3, b3 = pad_tcn(params["w_tcn3"], params["b_tcn3"])

    wfc = jnp.pad(params["w_fc"].astype(jnp.float32),
                  ((0, DP - D), (0, NCP - NC))).astype(jnp.bfloat16)
    bfc = jnp.pad(params["b_fc"].astype(jnp.float32),
                  ((0, 0), (0, NCP - NC)))

    # Batch grid: bb whole sequences per block -> rolls never cross blocks.
    bb = _choose_bb(B, T)
    rows = bb * T
    grid = (B // bb,)

    kernel = functools.partial(_fused_kernel, T=T)

    out = pl.pallas_call(
        kernel,
        out_shape=jax.ShapeDtypeStruct((B * T, NCP), jnp.float32),
        grid=grid,
        in_specs=[
            pl.BlockSpec((rows, C), lambda i: (i, 0)),           # activations
            pl.BlockSpec((C, DP), lambda i: (0, 0)),             # weights:
            pl.BlockSpec((1, DP), lambda i: (0, 0)),             #  constant
            pl.BlockSpec((5 * DP, DP), lambda i: (0, 0)),        #  index maps
            pl.BlockSpec((1, DP), lambda i: (0, 0)),             #  -> DMA'd
            pl.BlockSpec((5 * DP, DP), lambda i: (0, 0)),        #  once
            pl.BlockSpec((1, DP), lambda i: (0, 0)),
            pl.BlockSpec((5 * DP, DP), lambda i: (0, 0)),
            pl.BlockSpec((1, DP), lambda i: (0, 0)),
            pl.BlockSpec((DP, NCP), lambda i: (0, 0)),
            pl.BlockSpec((1, NCP), lambda i: (0, 0)),
        ],
        out_specs=pl.BlockSpec((rows, NCP), lambda i: (i, 0)),
        compiler_params=pltpu.CompilerParams(
            dimension_semantics=("parallel",)),
    )(pooled, w_fold, b_fold, w1, b1, w2, b2, w3, b3, wfc, bfc)

    # Strip lane padding; logits are (B, T, num_classes + 1).
    return out[:, :NC].reshape(B, T, NC)


def init_params(key, C, D, num_classes):
    NC = num_classes + 1
    ks = jax.random.split(key, 9)
    s = 0.1
    return {
        # feature stub projection (replaces timm backbone head)
        "w_feat": s * jax.random.normal(ks[0], (C, D), jnp.float32),
        "b_feat": s * jax.random.normal(ks[1], (1, D), jnp.float32),
        # TCN: Conv1d weights stored as (K, C_in, C_out) = PyTorch (C_out,C_in,K).T
        "w_tcn1": s * jax.random.normal(ks[2], (5, D, D), jnp.float32),
        "b_tcn1": s * jax.random.normal(ks[3], (1, D), jnp.float32),
        "w_tcn2": s * jax.random.normal(ks[4], (5, D, D), jnp.float32),
        "b_tcn2": s * jax.random.normal(ks[5], (1, D), jnp.float32),
        "w_tcn3": s * jax.random.normal(ks[6], (5, D, D), jnp.float32),
        "b_tcn3": s * jax.random.normal(ks[7], (1, D), jnp.float32),
        # FC head: Linear(D, num_classes + 1)   (dropout is identity in eval)
        "w_fc": s * jax.random.normal(ks[8], (D, NC), jnp.float32),
        "b_fc": jnp.zeros((1, NC), jnp.float32),
    }


# Pure-JAX f32 reference (same math as the PyTorch module with the feature stub).
def _reference_forward(x, params):
    B, T, C, H, W = x.shape
    std = jnp.asarray(IMAGENET_STD, jnp.float32).reshape(1, C, 1, 1)
    mean = jnp.asarray(IMAGENET_MEAN, jnp.float32).reshape(1, C, 1, 1)
    xf = x.reshape(B * T, C, H, W) / 255.0
    xf = (xf - mean) / std
    pooled = xf.mean(axis=(2, 3))                              # (B*T, C)
    feat = pooled @ params["w_feat"] + params["b_feat"]        # (B*T, D)
    feat = feat.reshape(B, T, -1)

    def conv1d_relu(h, w, b, dil):
        pad = 2 * dil
        hp = jnp.pad(h, ((0, 0), (pad, pad), (0, 0)))
        out = b[None]
        for k in range(5):
            out = out + jnp.einsum("btc,cd->btd",
                                   hp[:, k * dil:k * dil + T, :], w[k])
        return jax.nn.relu(out)

    h = conv1d_relu(feat, params["w_tcn1"], params["b_tcn1"], 1)
    h = conv1d_relu(h, params["w_tcn2"], params["b_tcn2"], 2)
    h = conv1d_relu(h, params["w_tcn3"], params["b_tcn3"], 4)
    return h @ params["w_fc"] + params["b_fc"]


if __name__ == "__main__":
    B, T, C, H, W = 2, 8, 3, 16, 16      # batch, clip_len, channels, height, width
    D = 32                               # feature dim (self._d)
    NUM_CLASSES = 4                      # logits dim = num_classes + 1 = 5

    key = jax.random.PRNGKey(0)
    kx, kp = jax.random.split(key)
    # raw uint8-range pixels, as the module expects (it divides by 255 internally)
    x = jax.random.uniform(kx, (B, T, C, H, W), jnp.float32, 0.0, 255.0)
    params = init_params(kp, C, D, NUM_CLASSES)

    logits = rgb_classifier_forward(x, params)
    jax.block_until_ready(logits)
    assert logits.shape == (B, T, NUM_CLASSES + 1), logits.shape
    assert logits.dtype == jnp.float32

    ref = _reference_forward(x, params)
    max_err = float(jnp.max(jnp.abs(logits - ref)))
    # bf16 matmul operands (f32 accumulation) vs. pure-f32 reference.
    assert max_err < 3e-2, f"mismatch vs reference: {max_err}"

    print("KERNEL_OK")
</pallas_src>

<mosaic_0001>
module attributes {stable_mosaic.version = 11 : i64} {
  func.func @_fused_kernel(%arg0: i32, %arg1: memref<8x3xf32, #tpu.memory_space<vmem>>, %arg2: memref<3x128xbf16, #tpu.memory_space<vmem>>, %arg3: memref<1x128xf32, #tpu.memory_space<vmem>>, %arg4: memref<640x128xbf16, #tpu.memory_space<vmem>>, %arg5: memref<1x128xf32, #tpu.memory_space<vmem>>, %arg6: memref<640x128xbf16, #tpu.memory_space<vmem>>, %arg7: memref<1x128xf32, #tpu.memory_space<vmem>>, %arg8: memref<640x128xbf16, #tpu.memory_space<vmem>>, %arg9: memref<1x128xf32, #tpu.memory_space<vmem>>, %arg10: memref<128x128xbf16, #tpu.memory_space<vmem>>, %arg11: memref<1x128xf32, #tpu.memory_space<vmem>>, %arg12: memref<8x128xf32, #tpu.memory_space<vmem>>) attributes {dimension_semantics = [#tpu.dimension_semantics<parallel>], iteration_bounds = array<i64: 2>, scalar_prefetch = 0 : i64, scratch_operands = 0 : i64, tpu.core_type = #tpu.core_type<tc>, window_params = [{transform_indices = @transform_0, window_bounds = array<i64: 8, 3>}, {pipeline_mode = #tpu.pipeline_mode<synchronous>, transform_indices = @transform_1, window_bounds = array<i64: 3, 128>}, {pipeline_mode = #tpu.pipeline_mode<synchronous>, transform_indices = @transform_2, window_bounds = array<i64: 1, 128>}, {pipeline_mode = #tpu.pipeline_mode<synchronous>, transform_indices = @transform_3, window_bounds = array<i64: 640, 128>}, {pipeline_mode = #tpu.pipeline_mode<synchronous>, transform_indices = @transform_4, window_bounds = array<i64: 1, 128>}, {pipeline_mode = #tpu.pipeline_mode<synchronous>, transform_indices = @transform_5, window_bounds = array<i64: 640, 128>}, {pipeline_mode = #tpu.pipeline_mode<synchronous>, transform_indices = @transform_6, window_bounds = array<i64: 1, 128>}, {pipeline_mode = #tpu.pipeline_mode<synchronous>, transform_indices = @transform_7, window_bounds = array<i64: 640, 128>}, {pipeline_mode = #tpu.pipeline_mode<synchronous>, transform_indices = @transform_8, window_bounds = array<i64: 1, 128>}, {pipeline_mode = #tpu.pipeline_mode<synchronous>, transform_indices = @transform_9, window_bounds = array<i64: 128, 128>}, {pipeline_mode = #tpu.pipeline_mode<synchronous>, transform_indices = @transform_10, window_bounds = array<i64: 1, 128>}, {transform_indices = @transform_11, window_bounds = array<i64: 8, 128>}]} {
    %c0 = arith.constant 0 : index
    %c0_0 = arith.constant 0 : index
    %0 = vector.load %arg1[%c0, %c0_0] : memref<8x3xf32, #tpu.memory_space<vmem>>, vector<8x3xf32>
    %1 = arith.truncf %0 : vector<8x3xf32> to vector<8x3xbf16>
    %c0_1 = arith.constant 0 : index
    %c0_2 = arith.constant 0 : index
    %2 = vector.load %arg2[%c0_1, %c0_2] : memref<3x128xbf16, #tpu.memory_space<vmem>>, vector<3x128xbf16>
    %cst = arith.constant dense<0.000000e+00> : vector<8x128xf32>
    %3 = tpu.matmul %1, %2, %cst {dimension_numbers = #tpu.dot_dimension_numbers<[1], [0], [0], [1], [0, 0, 1, 1], [], []>} : vector<8x3xbf16>, vector<3x128xbf16>, vector<8x128xf32> -> vector<8x128xf32>
    %c0_3 = arith.constant 0 : index
    %c0_4 = arith.constant 0 : index
    %4 = vector.load %arg3[%c0_3, %c0_4] : memref<1x128xf32, #tpu.memory_space<vmem>>, vector<1x128xf32>
    %5 = vector.broadcast %4 : vector<1x128xf32> to vector<8x128xf32>
    %6 = arith.addf %3, %5 : vector<8x128xf32>
    %7 = tpu.iota {dimensions = array<i32: 0>} : vector<8x1xi32>
    %c8_i32 = arith.constant 8 : i32
    %c0_i32 = arith.constant 0 : i32
    %8 = arith.cmpi eq, %c8_i32, %c0_i32 : i32
    %c1_i32 = arith.constant 1 : i32
    %9 = arith.select %8, %c1_i32, %c8_i32 : i32
    %10 = vector.broadcast %9 : i32 to vector<8x1xi32>
    %11 = arith.remsi %7, %10 : vector<8x1xi32>
    %c0_i32_5 = arith.constant 0 : i32
    %12 = vector.broadcast %c0_i32_5 : i32 to vector<8x1xi32>
    %13 = arith.cmpi ne, %11, %12 : vector<8x1xi32>
    %c0_i32_6 = arith.constant 0 : i32
    %14 = vector.broadcast %c0_i32_6 : i32 to vector<8x1xi32>
    %15 = arith.cmpi slt, %11, %14 : vector<8x1xi32>
    %c0_i32_7 = arith.constant 0 : i32
    %16 = arith.cmpi slt, %9, %c0_i32_7 : i32
    %17 = vector.broadcast %16 : i1 to vector<8x1xi1>
    %18 = vector.broadcast %17 : vector<8x1xi1> to vector<8x1xi1>
    %19 = arith.xori %15, %18 : vector<8x1xi1>
    %20 = arith.andi %19, %13 : vector<8x1xi1>
    %21 = vector.broadcast %9 : i32 to vector<8x1xi32>
    %22 = arith.addi %11, %21 : vector<8x1xi32>
    %23 = arith.select %20, %22, %11 : vector<8x1xi1>, vector<8x1xi32>
    %c2_i32 = arith.constant 2 : i32
    %24 = tpu.dynamic_rotate %6 by %c2_i32 dim 0 : vector<8x128xf32>, i32 -> vector<8x128xf32>
    %c-2_i32 = arith.constant -2 : i32
    %25 = vector.broadcast %c-2_i32 : i32 to vector<8x1xi32>
    %26 = arith.addi %23, %25 : vector<8x1xi32>
    %c0_i32_8 = arith.constant 0 : i32
    %27 = vector.broadcast %c0_i32_8 : i32 to vector<8x1xi32>
    %28 = arith.cmpi sge, %26, %27 : vector<8x1xi32>
    %c-2_i32_9 = arith.constant -2 : i32
    %29 = vector.broadcast %c-2_i32_9 : i32 to vector<8x1xi32>
    %30 = arith.addi %23, %29 : vector<8x1xi32>
    %c8_i32_10 = arith.constant 8 : i32
    %31 = vector.broadcast %c8_i32_10 : i32 to vector<8x1xi32>
    %32 = arith.cmpi slt, %30, %31 : vector<8x1xi32>
    %33 = arith.andi %28, %32 : vector<8x1xi1>
    %cst_11 = arith.constant 0.000000e+00 : f32
    %34 = vector.shape_cast %33 : vector<8x1xi1> to vector<8x1xi1>
    %35 = vector.broadcast %34 : vector<8x1xi1> to vector<8x128xi1>
    %36 = vector.broadcast %cst_11 : f32 to vector<8x128xf32>
    %37 = arith.select %35, %24, %36 : vector<8x128xi1>, vector<8x128xf32>
    %c1_i32_12 = arith.constant 1 : i32
    %38 = tpu.dynamic_rotate %6 by %c1_i32_12 dim 0 : vector<8x128xf32>, i32 -> vector<8x128xf32>
    %c-1_i32 = arith.constant -1 : i32
    %39 = vector.broadcast %c-1_i32 : i32 to vector<8x1xi32>
    %40 = arith.addi %23, %39 : vector<8x1xi32>
    %c0_i32_13 = arith.constant 0 : i32
    %41 = vector.broadcast %c0_i32_13 : i32 to vector<8x1xi32>
    %42 = arith.cmpi sge, %40, %41 : vector<8x1xi32>
    %c-1_i32_14 = arith.constant -1 : i32
    %43 = vector.broadcast %c-1_i32_14 : i32 to vector<8x1xi32>
    %44 = arith.addi %23, %43 : vector<8x1xi32>
    %c8_i32_15 = arith.constant 8 : i32
    %45 = vector.broadcast %c8_i32_15 : i32 to vector<8x1xi32>
    %46 = arith.cmpi slt, %44, %45 : vector<8x1xi32>
    %47 = arith.andi %42, %46 : vector<8x1xi1>
    %cst_16 = arith.constant 0.000000e+00 : f32
    %48 = vector.shape_cast %47 : vector<8x1xi1> to vector<8x1xi1>
    %49 = vector.broadcast %48 : vector<8x1xi1> to vector<8x128xi1>
    %50 = vector.broadcast %cst_16 : f32 to vector<8x128xf32>
    %51 = arith.select %49, %38, %50 : vector<8x128xi1>, vector<8x128xf32>
    %c7_i32 = arith.constant 7 : i32
    %52 = tpu.dynamic_rotate %6 by %c7_i32 dim 0 : vector<8x128xf32>, i32 -> vector<8x128xf32>
    %c1_i32_17 = arith.constant 1 : i32
    %53 = vector.broadcast %c1_i32_17 : i32 to vector<8x1xi32>
    %54 = arith.addi %23, %53 : vector<8x1xi32>
    %c0_i32_18 = arith.constant 0 : i32
    %55 = vector.broadcast %c0_i32_18 : i32 to vector<8x1xi32>
    %56 = arith.cmpi sge, %54, %55 : vector<8x1xi32>
    %c1_i32_19 = arith.constant 1 : i32
    %57 = vector.broadcast %c1_i32_19 : i32 to vector<8x1xi32>
    %58 = arith.addi %23, %57 : vector<8x1xi32>
    %c8_i32_20 = arith.constant 8 : i32
    %59 = vector.broadcast %c8_i32_20 : i32 to vector<8x1xi32>
    %60 = arith.cmpi slt, %58, %59 : vector<8x1xi32>
    %61 = arith.andi %56, %60 : vector<8x1xi1>
    %cst_21 = arith.constant 0.000000e+00 : f32
    %62 = vector.shape_cast %61 : vector<8x1xi1> to vector<8x1xi1>
    %63 = vector.broadcast %62 : vector<8x1xi1> to vector<8x128xi1>
    %64 = vector.broadcast %cst_21 : f32 to vector<8x128xf32>
    %65 = arith.select %63, %52, %64 : vector<8x128xi1>, vector<8x128xf32>
    %c6_i32 = arith.constant 6 : i32
    %66 = tpu.dynamic_rotate %6 by %c6_i32 dim 0 : vector<8x128xf32>, i32 -> vector<8x128xf32>
    %c2_i32_22 = arith.constant 2 : i32
    %67 = vector.broadcast %c2_i32_22 : i32 to vector<8x1xi32>
    %68 = arith.addi %23, %67 : vector<8x1xi32>
    %c0_i32_23 = arith.constant 0 : i32
    %69 = vector.broadcast %c0_i32_23 : i32 to vector<8x1xi32>
    %70 = arith.cmpi sge, %68, %69 : vector<8x1xi32>
    %c2_i32_24 = arith.constant 2 : i32
    %71 = vector.broadcast %c2_i32_24 : i32 to vector<8x1xi32>
    %72 = arith.addi %23, %71 : vector<8x1xi32>
    %c8_i32_25 = arith.constant 8 : i32
    %73 = vector.broadcast %c8_i32_25 : i32 to vector<8x1xi32>
    %74 = arith.cmpi slt, %72, %73 : vector<8x1xi32>
    %75 = arith.andi %70, %74 : vector<8x1xi1>
    %cst_26 = arith.constant 0.000000e+00 : f32
    %76 = vector.shape_cast %75 : vector<8x1xi1> to vector<8x1xi1>
    %77 = vector.broadcast %76 : vector<8x1xi1> to vector<8x128xi1>
    %78 = vector.broadcast %cst_26 : f32 to vector<8x128xf32>
    %79 = arith.select %77, %66, %78 : vector<8x128xi1>, vector<8x128xf32>
    %80 = tpu.concatenate %37, %51, %6, %65, %79 in 1 : vector<8x128xf32>, vector<8x128xf32>, vector<8x128xf32>, vector<8x128xf32>, vector<8x128xf32> -> vector<8x640xf32>
    %81 = arith.truncf %80 : vector<8x640xf32> to vector<8x640xbf16>
    %c0_27 = arith.constant 0 : index
    %c0_28 = arith.constant 0 : index
    %82 = vector.load %arg4[%c0_27, %c0_28] : memref<640x128xbf16, #tpu.memory_space<vmem>>, vector<640x128xbf16>
    %cst_29 = arith.constant dense<0.000000e+00> : vector<8x128xf32>
    %83 = tpu.matmul %81, %82, %cst_29 {dimension_numbers = #tpu.dot_dimension_numbers<[1], [0], [0], [1], [0, 0, 1, 1], [], []>} : vector<8x640xbf16>, vector<640x128xbf16>, vector<8x128xf32> -> vector<8x128xf32>
    %c0_30 = arith.constant 0 : index
    %c0_31 = arith.constant 0 : index
    %84 = vector.load %arg5[%c0_30, %c0_31] : memref<1x128xf32, #tpu.memory_space<vmem>>, vector<1x128xf32>
    %85 = vector.broadcast %84 : vector<1x128xf32> to vector<8x128xf32>
    %86 = arith.addf %83, %85 : vector<8x128xf32>
    %cst_32 = arith.constant 0.000000e+00 : f32
    %87 = vector.broadcast %cst_32 : f32 to vector<8x128xf32>
    %88 = arith.maximumf %86, %87 : vector<8x128xf32>
    %c4_i32 = arith.constant 4 : i32
    %89 = tpu.dynamic_rotate %88 by %c4_i32 dim 0 : vector<8x128xf32>, i32 -> vector<8x128xf32>
    %c-4_i32 = arith.constant -4 : i32
    %90 = vector.broadcast %c-4_i32 : i32 to vector<8x1xi32>
    %91 = arith.addi %23, %90 : vector<8x1xi32>
    %c0_i32_33 = arith.constant 0 : i32
    %92 = vector.broadcast %c0_i32_33 : i32 to vector<8x1xi32>
    %93 = arith.cmpi sge, %91, %92 : vector<8x1xi32>
    %c-4_i32_34 = arith.constant -4 : i32
    %94 = vector.broadcast %c-4_i32_34 : i32 to vector<8x1xi32>
    %95 = arith.addi %23, %94 : vector<8x1xi32>
    %c8_i32_35 = arith.constant 8 : i32
    %96 = vector.broadcast %c8_i32_35 : i32 to vector<8x1xi32>
    %97 = arith.cmpi slt, %95, %96 : vector<8x1xi32>
    %98 = arith.andi %93, %97 : vector<8x1xi1>
    %cst_36 = arith.constant 0.000000e+00 : f32
    %99 = vector.shape_cast %98 : vector<8x1xi1> to vector<8x1xi1>
    %100 = vector.broadcast %99 : vector<8x1xi1> to vector<8x128xi1>
    %101 = vector.broadcast %cst_36 : f32 to vector<8x128xf32>
    %102 = arith.select %100, %89, %101 : vector<8x128xi1>, vector<8x128xf32>
    %c2_i32_37 = arith.constant 2 : i32
    %103 = tpu.dynamic_rotate %88 by %c2_i32_37 dim 0 : vector<8x128xf32>, i32 -> vector<8x128xf32>
    %c-2_i32_38 = arith.constant -2 : i32
    %104 = vector.broadcast %c-2_i32_38 : i32 to vector<8x1xi32>
    %105 = arith.addi %23, %104 : vector<8x1xi32>
    %c0_i32_39 = arith.constant 0 : i32
    %106 = vector.broadcast %c0_i32_39 : i32 to vector<8x1xi32>
    %107 = arith.cmpi sge, %105, %106 : vector<8x1xi32>
    %c-2_i32_40 = arith.constant -2 : i32
    %108 = vector.broadcast %c-2_i32_40 : i32 to vector<8x1xi32>
    %109 = arith.addi %23, %108 : vector<8x1xi32>
    %c8_i32_41 = arith.constant 8 : i32
    %110 = vector.broadcast %c8_i32_41 : i32 to vector<8x1xi32>
    %111 = arith.cmpi slt, %109, %110 : vector<8x1xi32>
    %112 = arith.andi %107, %111 : vector<8x1xi1>
    %cst_42 = arith.constant 0.000000e+00 : f32
    %113 = vector.shape_cast %112 : vector<8x1xi1> to vector<8x1xi1>
    %114 = vector.broadcast %113 : vector<8x1xi1> to vector<8x128xi1>
    %115 = vector.broadcast %cst_42 : f32 to vector<8x128xf32>
    %116 = arith.select %114, %103, %115 : vector<8x128xi1>, vector<8x128xf32>
    %c6_i32_43 = arith.constant 6 : i32
    %117 = tpu.dynamic_rotate %88 by %c6_i32_43 dim 0 : vector<8x128xf32>, i32 -> vector<8x128xf32>
    %c2_i32_44 = arith.constant 2 : i32
    %118 = vector.broadcast %c2_i32_44 : i32 to vector<8x1xi32>
    %119 = arith.addi %23, %118 : vector<8x1xi32>
    %c0_i32_45 = arith.constant 0 : i32
    %120 = vector.broadcast %c0_i32_45 : i32 to vector<8x1xi32>
    %121 = arith.cmpi sge, %119, %120 : vector<8x1xi32>
    %c2_i32_46 = arith.constant 2 : i32
    %122 = vector.broadcast %c2_i32_46 : i32 to vector<8x1xi32>
    %123 = arith.addi %23, %122 : vector<8x1xi32>
    %c8_i32_47 = arith.constant 8 : i32
    %124 = vector.broadcast %c8_i32_47 : i32 to vector<8x1xi32>
    %125 = arith.cmpi slt, %123, %124 : vector<8x1xi32>
    %126 = arith.andi %121, %125 : vector<8x1xi1>
    %cst_48 = arith.constant 0.000000e+00 : f32
    %127 = vector.shape_cast %126 : vector<8x1xi1> to vector<8x1xi1>
    %128 = vector.broadcast %127 : vector<8x1xi1> to vector<8x128xi1>
    %129 = vector.broadcast %cst_48 : f32 to vector<8x128xf32>
    %130 = arith.select %128, %117, %129 : vector<8x128xi1>, vector<8x128xf32>
    %c4_i32_49 = arith.constant 4 : i32
    %131 = tpu.dynamic_rotate %88 by %c4_i32_49 dim 0 : vector<8x128xf32>, i32 -> vector<8x128xf32>
    %c4_i32_50 = arith.constant 4 : i32
    %132 = vector.broadcast %c4_i32_50 : i32 to vector<8x1xi32>
    %133 = arith.addi %23, %132 : vector<8x1xi32>
    %c0_i32_51 = arith.constant 0 : i32
    %134 = vector.broadcast %c0_i32_51 : i32 to vector<8x1xi32>
    %135 = arith.cmpi sge, %133, %134 : vector<8x1xi32>
    %c4_i32_52 = arith.constant 4 : i32
    %136 = vector.broadcast %c4_i32_52 : i32 to vector<8x1xi32>
    %137 = arith.addi %23, %136 : vector<8x1xi32>
    %c8_i32_53 = arith.constant 8 : i32
    %138 = vector.broadcast %c8_i32_53 : i32 to vector<8x1xi32>
    %139 = arith.cmpi slt, %137, %138 : vector<8x1xi32>
    %140 = arith.andi %135, %139 : vector<8x1xi1>
    %cst_54 = arith.constant 0.000000e+00 : f32
    %141 = vector.shape_cast %140 : vector<8x1xi1> to vector<8x1xi1>
    %142 = vector.broadcast %141 : vector<8x1xi1> to vector<8x128xi1>
    %143 = vector.broadcast %cst_54 : f32 to vector<8x128xf32>
    %144 = arith.select %142, %131, %143 : vector<8x128xi1>, vector<8x128xf32>
    %145 = tpu.concatenate %102, %116, %88, %130, %144 in 1 : vector<8x128xf32>, vector<8x128xf32>, vector<8x128xf32>, vector<8x128xf32>, vector<8x128xf32> -> vector<8x640xf32>
    %146 = arith.truncf %145 : vector<8x640xf32> to vector<8x640xbf16>
    %c0_55 = arith.constant 0 : index
    %c0_56 = arith.constant 0 : index
    %147 = vector.load %arg6[%c0_55, %c0_56] : memref<640x128xbf16, #tpu.memory_space<vmem>>, vector<640x128xbf16>
    %cst_57 = arith.constant dense<0.000000e+00> : vector<8x128xf32>
    %148 = tpu.matmul %146, %147, %cst_57 {dimension_numbers = #tpu.dot_dimension_numbers<[1], [0], [0], [1], [0, 0, 1, 1], [], []>} : vector<8x640xbf16>, vector<640x128xbf16>, vector<8x128xf32> -> vector<8x128xf32>
    %c0_58 = arith.constant 0 : index
    %c0_59 = arith.constant 0 : index
    %149 = vector.load %arg7[%c0_58, %c0_59] : memref<1x128xf32, #tpu.memory_space<vmem>>, vector<1x128xf32>
    %150 = vector.broadcast %149 : vector<1x128xf32> to vector<8x128xf32>
    %151 = arith.addf %148, %150 : vector<8x128xf32>
    %cst_60 = arith.constant 0.000000e+00 : f32
    %152 = vector.broadcast %cst_60 : f32 to vector<8x128xf32>
    %153 = arith.maximumf %151, %152 : vector<8x128xf32>
    %c-8_i32 = arith.constant -8 : i32
    %154 = vector.broadcast %c-8_i32 : i32 to vector<8x1xi32>
    %155 = arith.addi %23, %154 : vector<8x1xi32>
    %c0_i32_61 = arith.constant 0 : i32
    %156 = vector.broadcast %c0_i32_61 : i32 to vector<8x1xi32>
    %157 = arith.cmpi sge, %155, %156 : vector<8x1xi32>
    %c-8_i32_62 = arith.constant -8 : i32
    %158 = vector.broadcast %c-8_i32_62 : i32 to vector<8x1xi32>
    %159 = arith.addi %23, %158 : vector<8x1xi32>
    %c8_i32_63 = arith.constant 8 : i32
    %160 = vector.broadcast %c8_i32_63 : i32 to vector<8x1xi32>
    %161 = arith.cmpi slt, %159, %160 : vector<8x1xi32>
    %162 = arith.andi %157, %161 : vector<8x1xi1>
    %cst_64 = arith.constant 0.000000e+00 : f32
    %163 = vector.shape_cast %162 : vector<8x1xi1> to vector<8x1xi1>
    %164 = vector.broadcast %163 : vector<8x1xi1> to vector<8x128xi1>
    %165 = vector.broadcast %cst_64 : f32 to vector<8x128xf32>
    %166 = arith.select %164, %153, %165 : vector<8x128xi1>, vector<8x128xf32>
    %c4_i32_65 = arith.constant 4 : i32
    %167 = tpu.dynamic_rotate %153 by %c4_i32_65 dim 0 : vector<8x128xf32>, i32 -> vector<8x128xf32>
    %c-4_i32_66 = arith.constant -4 : i32
    %168 = vector.broadcast %c-4_i32_66 : i32 to vector<8x1xi32>
    %169 = arith.addi %23, %168 : vector<8x1xi32>
    %c0_i32_67 = arith.constant 0 : i32
    %170 = vector.broadcast %c0_i32_67 : i32 to vector<8x1xi32>
    %171 = arith.cmpi sge, %169, %170 : vector<8x1xi32>
    %c-4_i32_68 = arith.constant -4 : i32
    %172 = vector.broadcast %c-4_i32_68 : i32 to vector<8x1xi32>
    %173 = arith.addi %23, %172 : vector<8x1xi32>
    %c8_i32_69 = arith.constant 8 : i32
    %174 = vector.broadcast %c8_i32_69 : i32 to vector<8x1xi32>
    %175 = arith.cmpi slt, %173, %174 : vector<8x1xi32>
    %176 = arith.andi %171, %175 : vector<8x1xi1>
    %cst_70 = arith.constant 0.000000e+00 : f32
    %177 = vector.shape_cast %176 : vector<8x1xi1> to vector<8x1xi1>
    %178 = vector.broadcast %177 : vector<8x1xi1> to vector<8x128xi1>
    %179 = vector.broadcast %cst_70 : f32 to vector<8x128xf32>
    %180 = arith.select %178, %167, %179 : vector<8x128xi1>, vector<8x128xf32>
    %c4_i32_71 = arith.constant 4 : i32
    %181 = tpu.dynamic_rotate %153 by %c4_i32_71 dim 0 : vector<8x128xf32>, i32 -> vector<8x128xf32>
    %c4_i32_72 = arith.constant 4 : i32
    %182 = vector.broadcast %c4_i32_72 : i32 to vector<8x1xi32>
    %183 = arith.addi %23, %182 : vector<8x1xi32>
    %c0_i32_73 = arith.constant 0 : i32
    %184 = vector.broadcast %c0_i32_73 : i32 to vector<8x1xi32>
    %185 = arith.cmpi sge, %183, %184 : vector<8x1xi32>
    %c4_i32_74 = arith.constant 4 : i32
    %186 = vector.broadcast %c4_i32_74 : i32 to vector<8x1xi32>
    %187 = arith.addi %23, %186 : vector<8x1xi32>
    %c8_i32_75 = arith.constant 8 : i32
    %188 = vector.broadcast %c8_i32_75 : i32 to vector<8x1xi32>
    %189 = arith.cmpi slt, %187, %188 : vector<8x1xi32>
    %190 = arith.andi %185, %189 : vector<8x1xi1>
    %cst_76 = arith.constant 0.000000e+00 : f32
    %191 = vector.shape_cast %190 : vector<8x1xi1> to vector<8x1xi1>
    %192 = vector.broadcast %191 : vector<8x1xi1> to vector<8x128xi1>
    %193 = vector.broadcast %cst_76 : f32 to vector<8x128xf32>
    %194 = arith.select %192, %181, %193 : vector<8x128xi1>, vector<8x128xf32>
    %c8_i32_77 = arith.constant 8 : i32
    %195 = vector.broadcast %c8_i32_77 : i32 to vector<8x1xi32>
    %196 = arith.addi %23, %195 : vector<8x1xi32>
    %c0_i32_78 = arith.constant 0 : i32
    %197 = vector.broadcast %c0_i32_78 : i32 to vector<8x1xi32>
    %198 = arith.cmpi sge, %196, %197 : vector<8x1xi32>
    %c8_i32_79 = arith.constant 8 : i32
    %199 = vector.broadcast %c8_i32_79 : i32 to vector<8x1xi32>
    %200 = arith.addi %23, %199 : vector<8x1xi32>
    %c8_i32_80 = arith.constant 8 : i32
    %201 = vector.broadcast %c8_i32_80 : i32 to vector<8x1xi32>
    %202 = arith.cmpi slt, %200, %201 : vector<8x1xi32>
    %203 = arith.andi %198, %202 : vector<8x1xi1>
    %cst_81 = arith.constant 0.000000e+00 : f32
    %204 = vector.shape_cast %203 : vector<8x1xi1> to vector<8x1xi1>
    %205 = vector.broadcast %204 : vector<8x1xi1> to vector<8x128xi1>
    %206 = vector.broadcast %cst_81 : f32 to vector<8x128xf32>
    %207 = arith.select %205, %153, %206 : vector<8x128xi1>, vector<8x128xf32>
    %208 = tpu.concatenate %166, %180, %153, %194, %207 in 1 : vector<8x128xf32>, vector<8x128xf32>, vector<8x128xf32>, vector<8x128xf32>, vector<8x128xf32> -> vector<8x640xf32>
    %209 = arith.truncf %208 : vector<8x640xf32> to vector<8x640xbf16>
    %c0_82 = arith.constant 0 : index
    %c0_83 = arith.constant 0 : index
    %210 = vector.load %arg8[%c0_82, %c0_83] : memref<640x128xbf16, #tpu.memory_space<vmem>>, vector<640x128xbf16>
    %cst_84 = arith.constant dense<0.000000e+00> : vector<8x128xf32>
    %211 = tpu.matmul %209, %210, %cst_84 {dimension_numbers = #tpu.dot_dimension_numbers<[1], [0], [0], [1], [0, 0, 1, 1], [], []>} : vector<8x640xbf16>, vector<640x128xbf16>, vector<8x128xf32> -> vector<8x128xf32>
    %c0_85 = arith.constant 0 : index
    %c0_86 = arith.constant 0 : index
    %212 = vector.load %arg9[%c0_85, %c0_86] : memref<1x128xf32, #tpu.memory_space<vmem>>, vector<1x128xf32>
    %213 = vector.broadcast %212 : vector<1x128xf32> to vector<8x128xf32>
    %214 = arith.addf %211, %213 : vector<8x128xf32>
    %cst_87 = arith.constant 0.000000e+00 : f32
    %215 = vector.broadcast %cst_87 : f32 to vector<8x128xf32>
    %216 = arith.maximumf %214, %215 : vector<8x128xf32>
    %217 = arith.truncf %216 : vector<8x128xf32> to vector<8x128xbf16>
    %c0_88 = arith.constant 0 : index
    %c0_89 = arith.constant 0 : index
    %218 = vector.load %arg10[%c0_88, %c0_89] : memref<128x128xbf16, #tpu.memory_space<vmem>>, vector<128x128xbf16>
    %cst_90 = arith.constant dense<0.000000e+00> : vector<8x128xf32>
    %219 = tpu.matmul %217, %218, %cst_90 {dimension_numbers = #tpu.dot_dimension_numbers<[1], [0], [0], [1], [0, 0, 1, 1], [], []>} : vector<8x128xbf16>, vector<128x128xbf16>, vector<8x128xf32> -> vector<8x128xf32>
    %c0_91 = arith.constant 0 : index
    %c0_92 = arith.constant 0 : index
    %220 = vector.load %arg11[%c0_91, %c0_92] : memref<1x128xf32, #tpu.memory_space<vmem>>, vector<1x128xf32>
    %221 = vector.broadcast %220 : vector<1x128xf32> to vector<8x128xf32>
    %222 = arith.addf %219, %221 : vector<8x128xf32>
    %c0_93 = arith.constant 0 : index
    %c0_94 = arith.constant 0 : index
    %223 = vector.load %arg12[%c0_93, %c0_94] : memref<8x128xf32, #tpu.memory_space<vmem>>, vector<8x128xf32>
    tpu.vector_store %arg12[%c0_93, %c0_94], %222 {strides = array<i32>} : memref<8x128xf32, #tpu.memory_space<vmem>>, vector<8x128xf32>,
    return
  }
  func.func @transform_0(%arg0: i32) -> (i32, i32) {
    %c0_i32 = arith.constant 0 : i32
    %c0_i32_0 = arith.constant 0 : i32
    return %arg0, %c0_i32 : i32, i32
  }
  func.func @transform_1(%arg0: i32) -> (i32, i32) {
    %c0_i32 = arith.constant 0 : i32
    %c0_i32_0 = arith.constant 0 : i32
    %c0_i32_1 = arith.constant 0 : i32
    return %c0_i32, %c0_i32_0 : i32, i32
  }
  func.func @transform_2(%arg0: i32) -> (i32, i32) {
    %c0_i32 = arith.constant 0 : i32
    %c0_i32_0 = arith.constant 0 : i32
    %c0_i32_1 = arith.constant 0 : i32
    return %c0_i32, %c0_i32_0 : i32, i32
  }
  func.func @transform_3(%arg0: i32) -> (i32, i32) {
    %c0_i32 = arith.constant 0 : i32
    %c0_i32_0 = arith.constant 0 : i32
    %c0_i32_1 = arith.constant 0 : i32
    return %c0_i32, %c0_i32_0 : i32, i32
  }
  func.func @transform_4(%arg0: i32) -> (i32, i32) {
    %c0_i32 = arith.constant 0 : i32
    %c0_i32_0 = arith.constant 0 : i32
    %c0_i32_1 = arith.constant 0 : i32
    return %c0_i32, %c0_i32_0 : i32, i32
  }
  func.func @transform_5(%arg0: i32) -> (i32, i32) {
    %c0_i32 = arith.constant 0 : i32
    %c0_i32_0 = arith.constant 0 : i32
    %c0_i32_1 = arith.constant 0 : i32
    return %c0_i32, %c0_i32_0 : i32, i32
  }
  func.func @transform_6(%arg0: i32) -> (i32, i32) {
    %c0_i32 = arith.constant 0 : i32
    %c0_i32_0 = arith.constant 0 : i32
    %c0_i32_1 = arith.constant 0 : i32
    return %c0_i32, %c0_i32_0 : i32, i32
  }
  func.func @transform_7(%arg0: i32) -> (i32, i32) {
    %c0_i32 = arith.constant 0 : i32
    %c0_i32_0 = arith.constant 0 : i32
    %c0_i32_1 = arith.constant 0 : i32
    return %c0_i32, %c0_i32_0 : i32, i32
  }
  func.func @transform_8(%arg0: i32) -> (i32, i32) {
    %c0_i32 = arith.constant 0 : i32
    %c0_i32_0 = arith.constant 0 : i32
    %c0_i32_1 = arith.constant 0 : i32
    return %c0_i32, %c0_i32_0 : i32, i32
  }
  func.func @transform_9(%arg0: i32) -> (i32, i32) {
    %c0_i32 = arith.constant 0 : i32
    %c0_i32_0 = arith.constant 0 : i32
    %c0_i32_1 = arith.constant 0 : i32
    return %c0_i32, %c0_i32_0 : i32, i32
  }
  func.func @transform_10(%arg0: i32) -> (i32, i32) {
    %c0_i32 = arith.constant 0 : i32
    %c0_i32_0 = arith.constant 0 : i32
    %c0_i32_1 = arith.constant 0 : i32
    return %c0_i32, %c0_i32_0 : i32, i32
  }
  func.func @transform_11(%arg0: i32) -> (i32, i32) {
    %c0_i32 = arith.constant 0 : i32
    %c0_i32_0 = arith.constant 0 : i32
    return %arg0, %c0_i32 : i32, i32
  }
}

</mosaic_0001>

<llo_original>
// kernel: tpu_custom_call.1
$region0: #{tpu_custom_call.1}
  #allocation0 [shape = 'u32[]', space=smem, size = 0x4, offset = 0x4, fixed_abs, tag = 'smem constant byte address 0x4 - core index']
  #allocation1 [shape = 'u32[144,128]{1,0:T(1,128)}', space=vmem, size = 0x12000, scoped, tag = 'internal scratch']
  %s0 = inlined_call_operand.vmem [shape: f32[16,3], index: 0, kind: input, shape index: {}]
  %s1 = inlined_call_operand.vmem [shape: bf16[3,128], index: 1, kind: input, shape index: {}]
  %s2 = inlined_call_operand.vmem [shape: f32[1,128], index: 2, kind: input, shape index: {}]
  %s3 = inlined_call_operand.hbm [shape: bf16[640,128], index: 3, kind: input, shape index: {}]
  %s4 = inlined_call_operand.vmem [shape: f32[1,128], index: 4, kind: input, shape index: {}]
  %s5 = inlined_call_operand.hbm [shape: bf16[640,128], index: 5, kind: input, shape index: {}]
  %s6 = inlined_call_operand.vmem [shape: f32[1,128], index: 6, kind: input, shape index: {}]
  %s7 = inlined_call_operand.hbm [shape: bf16[640,128], index: 7, kind: input, shape index: {}]
  %s8 = inlined_call_operand.vmem [shape: f32[1,128], index: 8, kind: input, shape index: {}]
  %s9 = inlined_call_operand.hbm [shape: bf16[128,128], index: 9, kind: input, shape index: {}]
  %s10 = inlined_call_operand.vmem [shape: f32[1,128], index: 10, kind: input, shape index: {}]
  %s11 = inlined_call_operand.hbm [shape: f32[16,128], index: 11, kind: output, shape index: {}]
  %s12 = sld [smem:[#allocation0]]
  $region93: #{tpu_custom_call.1} parent=0
    _
  %s14 = ssub.s32 1, %s12
  %s15 = scalar_select 0, %s14, %s12
  $region1: #{tpu_custom_call.1} parent=0
    #allocation2 [shape = 'u8[163840]{0}', space=vmem, size = 0x28000, scoped, tag = 'input window, operand 3, single buffered']
    #allocation3 [shape = 's32[2]{0}', space=sflag, size = 0x8, scoped, tag = 'scoped memory for tpu_custom_call.1']
    #allocation4 [shape = 's32[2]{0}', space=sflag, size = 0x8, scoped, tag = 'scoped memory for tpu_custom_call.1']
    #allocation5 [shape = 'u8[163840]{0}', space=vmem, size = 0x28000, scoped, tag = 'input window, operand 5, single buffered']
    #allocation6 [shape = 's32[1]{0}', space=sflag, size = 0x4, scoped, tag = 'scoped memory for tpu_custom_call.1']
    #allocation7 [shape = 'u8[163840]{0}', space=vmem, size = 0x28000, scoped, tag = 'input window, operand 7, single buffered']
    #allocation8 [shape = 'u8[32768]{0}', space=vmem, size = 0x8000, scoped, tag = 'input window, operand 9, single buffered']
    #allocation9 [shape = 's32[1]{0}', space=sflag, size = 0x4, scoped, tag = 'scoped memory for tpu_custom_call.1']
    #allocation10 [shape = 'u8[8192]{0}', space=vmem, size = 0x2000, scoped, tag = 'output window, operand 0']
    %16 = vsyncpa [#allocation3], 0
    %17 = vsyncpa [#allocation6], 0
    %18 = vsyncpa [#allocation9], 0
    %19 = vsyncpa [#allocation4], 0
    %s20 = scalar_lea.sflag [#allocation4], 1
    %21 = vsyncpa %s20, 0
    loop: start=0, step=1, limit=4
    $region2: #{tpu_custom_call.1} parent=1 // loop_pre_header
      _
    $region3: #{tpu_custom_call.1} parent=1 // loop_header
      %s23 = sphi 0, %s27
      %p24 = scmp.ge.s32.totalorder %s23, 4
      %s33 = sphi 0, %s35
      %s36 = sphi 0, %s33
      %s37 = sphi 0, %s36
      %s53 = sphi 0, %s37
      %s57 = sphi 0, %s57
      %s59 = sphi 0, %s57
      %s60 = sphi 0, %s59
      %s74 = sphi 0, %s60
      %s78 = sphi 0, %s78
      %s80 = sphi 0, %s78
      %s81 = sphi 0, %s80
      %s95 = sphi 0, %s81
      %s99 = sphi 0, %s99
      %s101 = sphi 0, %s99
      %s102 = sphi 0, %s101
      %s116 = sphi 0, %s102
      %s120 = sphi 0, %s120
      %s122 = sphi 0, %s120
      %s123 = sphi 0, %s122
      %s137 = sphi 0, %s123
      %s141 = sphi 0, %s141
      %s143 = sphi 0, %s141
      %s144 = sphi 0, %s143
      %s158 = sphi 0, %s144
      %s162 = sphi 0, %s162
      %s164 = sphi 0, %s162
      %s165 = sphi 0, %s164
      %s179 = sphi 0, %s165
      %s183 = sphi 0, %s183
      %s185 = sphi 0, %s183
      %s186 = sphi 0, %s185
      %s200 = sphi 0, %s186
      %s204 = sphi 0, %s204
      %s206 = sphi 0, %s204
      %s207 = sphi 0, %s206
      %s221 = sphi 0, %s207
      %s225 = sphi 0, %s225
      %s227 = sphi 0, %s225
      %s228 = sphi 0, %s227
      %s242 = sphi 0, %s228
      %s246 = sphi 0, %s246
      %s248 = sphi 0, %s246
      %s249 = sphi 0, %s248
      %s263 = sphi 0, %s249
      %s269 = sphi 0, %s271
      %s272 = sphi 0, %s269
      %s273 = sphi 0, %s272
      %s289 = sphi 0, %s273
    $region4: #{tpu_custom_call.1} parent=1 // loop_header_branch
      %26 = sbr.rel (%p24) target = $region8
    $region5: #{tpu_custom_call.1} parent=1 // loop_body
      %s28 = ssub.s32 %s23, 1
      %s29 = ssub.s32 %s23, 2
      %s30 = sadd.s32 %s23, 1
      %s31 = ssub.s32 %s23, %s30
      %p32 = scmp.eq.s32.totalorder %s31, 0
      %s34 = sadd.s32 %s33, 1
      %s35 = scalar_select %p32, %s33, %s34
      %p38 = pneg %p32
      %p39 = scmp.eq.s32.totalorder %s23, 1
      %p40 = por %p38, %p39
      %p41 = scmp.ne.s32.totalorder %s33, %s36
      %p42 = scmp.eq.s32.totalorder %s23, 0
      %p43 = por %p41, %p42
      %p44 = scmp.ne.s32.totalorder %s33, %s36
      %p45 = scmp.eq.s32.totalorder %s28, 1
      %p46 = por %p44, %p45
      %p47 = scmp.ne.s32.totalorder %s36, %s37
      %p48 = scmp.eq.s32.totalorder %s28, 0
      %p49 = por %p47, %p48
      %p50 = scmp.ne.s32.totalorder %s36, %s37
      %p51 = scmp.eq.s32.totalorder %s29, 1
      %p52 = por %p50, %p51
      %p54 = scmp.ne.s32.totalorder %s37, %s53
      %p55 = scmp.eq.s32.totalorder %s29, 0
      %p56 = por %p54, %p55
      %s58 = sadd.s32 %s57, 1
      %p61 = scmp.eq.s32.totalorder %s23, 1
      %p62 = scmp.ne.s32.totalorder %s57, %s59
      %p63 = scmp.eq.s32.totalorder %s23, 0
      %p64 = por %p62, %p63
      %p65 = scmp.ne.s32.totalorder %s57, %s59
      %p66 = scmp.eq.s32.totalorder %s28, 1
      %p67 = por %p65, %p66
      %p68 = scmp.ne.s32.totalorder %s59, %s60
      %p69 = scmp.eq.s32.totalorder %s28, 0
      %p70 = por %p68, %p69
      %p71 = scmp.ne.s32.totalorder %s59, %s60
      %p72 = scmp.eq.s32.totalorder %s29, 1
      %p73 = por %p71, %p72
      %p75 = scmp.ne.s32.totalorder %s60, %s74
      %p76 = scmp.eq.s32.totalorder %s29, 0
      %p77 = por %p75, %p76
      %s79 = sadd.s32 %s78, 1
      %p82 = scmp.eq.s32.totalorder %s23, 1
      %p83 = scmp.ne.s32.totalorder %s78, %s80
      %p84 = scmp.eq.s32.totalorder %s23, 0
      %p85 = por %p83, %p84
      %p86 = scmp.ne.s32.totalorder %s78, %s80
      %p87 = scmp.eq.s32.totalorder %s28, 1
      %p88 = por %p86, %p87
      %p89 = scmp.ne.s32.totalorder %s80, %s81
      %p90 = scmp.eq.s32.totalorder %s28, 0
      %p91 = por %p89, %p90
      %p92 = scmp.ne.s32.totalorder %s80, %s81
      %p93 = scmp.eq.s32.totalorder %s29, 1
      %p94 = por %p92, %p93
      %p96 = scmp.ne.s32.totalorder %s81, %s95
      %p97 = scmp.eq.s32.totalorder %s29, 0
      %p98 = por %p96, %p97
      %s100 = sadd.s32 %s99, 1
      %p103 = scmp.eq.s32.totalorder %s23, 1
      %p104 = scmp.ne.s32.totalorder %s99, %s101
      %p105 = scmp.eq.s32.totalorder %s23, 0
      %p106 = por %p104, %p105
      %p107 = scmp.ne.s32.totalorder %s99, %s101
      %p108 = scmp.eq.s32.totalorder %s28, 1
      %p109 = por %p107, %p108
      %p110 = scmp.ne.s32.totalorder %s101, %s102
      %p111 = scmp.eq.s32.totalorder %s28, 0
      %p112 = por %p110, %p111
      %p113 = scmp.ne.s32.totalorder %s101, %s102
      %p114 = scmp.eq.s32.totalorder %s29, 1
      %p115 = por %p113, %p114
      %p117 = scmp.ne.s32.totalorder %s102, %s116
      %p118 = scmp.eq.s32.totalorder %s29, 0
      %p119 = por %p117, %p118
      %s121 = sadd.s32 %s120, 1
      %p124 = scmp.eq.s32.totalorder %s23, 1
      %p125 = scmp.ne.s32.totalorder %s120, %s122
      %p126 = scmp.eq.s32.totalorder %s23, 0
      %p127 = por %p125, %p126
      %p128 = scmp.ne.s32.totalorder %s120, %s122
      %p129 = scmp.eq.s32.totalorder %s28, 1
      %p130 = por %p128, %p129
      %p131 = scmp.ne.s32.totalorder %s122, %s123
      %p132 = scmp.eq.s32.totalorder %s28, 0
      %p133 = por %p131, %p132
      %p134 = scmp.ne.s32.totalorder %s122, %s123
      %p135 = scmp.eq.s32.totalorder %s29, 1
      %p136 = por %p134, %p135
      %p138 = scmp.ne.s32.totalorder %s123, %s137
      %p139 = scmp.eq.s32.totalorder %s29, 0
      %p140 = por %p138, %p139
      %s142 = sadd.s32 %s141, 1
      %p145 = scmp.eq.s32.totalorder %s23, 1
      %p146 = scmp.ne.s32.totalorder %s141, %s143
      %p147 = scmp.eq.s32.totalorder %s23, 0
      %p148 = por %p146, %p147
      %p149 = scmp.ne.s32.totalorder %s141, %s143
      %p150 = scmp.eq.s32.totalorder %s28, 1
      %p151 = por %p149, %p150
      %p152 = scmp.ne.s32.totalorder %s143, %s144
      %p153 = scmp.eq.s32.totalorder %s28, 0
      %p154 = por %p152, %p153
      %p155 = scmp.ne.s32.totalorder %s143, %s144
      %p156 = scmp.eq.s32.totalorder %s29, 1
      %p157 = por %p155, %p156
      %p159 = scmp.ne.s32.totalorder %s144, %s158
      %p160 = scmp.eq.s32.totalorder %s29, 0
      %p161 = por %p159, %p160
      %s163 = sadd.s32 %s162, 1
      %p166 = scmp.eq.s32.totalorder %s23, 1
      %p167 = scmp.ne.s32.totalorder %s162, %s164
      %p168 = scmp.eq.s32.totalorder %s23, 0
      %p169 = por %p167, %p168
      %p170 = scmp.ne.s32.totalorder %s162, %s164
      %p171 = scmp.eq.s32.totalorder %s28, 1
      %p172 = por %p170, %p171
      %p173 = scmp.ne.s32.totalorder %s164, %s165
      %p174 = scmp.eq.s32.totalorder %s28, 0
      %p175 = por %p173, %p174
      %p176 = scmp.ne.s32.totalorder %s164, %s165
      %p177 = scmp.eq.s32.totalorder %s29, 1
      %p178 = por %p176, %p177
      %p180 = scmp.ne.s32.totalorder %s165, %s179
      %p181 = scmp.eq.s32.totalorder %s29, 0
      %p182 = por %p180, %p181
      %s184 = sadd.s32 %s183, 1
      %p187 = scmp.eq.s32.totalorder %s23, 1
      %p188 = scmp.ne.s32.totalorder %s183, %s185
      %p189 = scmp.eq.s32.totalorder %s23, 0
      %p190 = por %p188, %p189
      %p191 = scmp.ne.s32.totalorder %s183, %s185
      %p192 = scmp.eq.s32.totalorder %s28, 1
      %p193 = por %p191, %p192
      %p194 = scmp.ne.s32.totalorder %s185, %s186
      %p195 = scmp.eq.s32.totalorder %s28, 0
      %p196 = por %p194, %p195
      %p197 = scmp.ne.s32.totalorder %s185, %s186
      %p198 = scmp.eq.s32.totalorder %s29, 1
      %p199 = por %p197, %p198
      %p201 = scmp.ne.s32.totalorder %s186, %s200
      %p202 = scmp.eq.s32.totalorder %s29, 0
      %p203 = por %p201, %p202
      %s205 = sadd.s32 %s204, 1
      %p208 = scmp.eq.s32.totalorder %s23, 1
      %p209 = scmp.ne.s32.totalorder %s204, %s206
      %p210 = scmp.eq.s32.totalorder %s23, 0
      %p211 = por %p209, %p210
      %p212 = scmp.ne.s32.totalorder %s204, %s206
      %p213 = scmp.eq.s32.totalorder %s28, 1
      %p214 = por %p212, %p213
      %p215 = scmp.ne.s32.totalorder %s206, %s207
      %p216 = scmp.eq.s32.totalorder %s28, 0
      %p217 = por %p215, %p216
      %p218 = scmp.ne.s32.totalorder %s206, %s207
      %p219 = scmp.eq.s32.totalorder %s29, 1
      %p220 = por %p218, %p219
      %p222 = scmp.ne.s32.totalorder %s207, %s221
      %p223 = scmp.eq.s32.totalorder %s29, 0
      %p224 = por %p222, %p223
      %s226 = sadd.s32 %s225, 1
      %p229 = scmp.eq.s32.totalorder %s23, 1
      %p230 = scmp.ne.s32.totalorder %s225, %s227
      %p231 = scmp.eq.s32.totalorder %s23, 0
      %p232 = por %p230, %p231
      %p233 = scmp.ne.s32.totalorder %s225, %s227
      %p234 = scmp.eq.s32.totalorder %s28, 1
      %p235 = por %p233, %p234
      %p236 = scmp.ne.s32.totalorder %s227, %s228
      %p237 = scmp.eq.s32.totalorder %s28, 0
      %p238 = por %p236, %p237
      %p239 = scmp.ne.s32.totalorder %s227, %s228
      %p240 = scmp.eq.s32.totalorder %s29, 1
      %p241 = por %p239, %p240
      %p243 = scmp.ne.s32.totalorder %s228, %s242
      %p244 = scmp.eq.s32.totalorder %s29, 0
      %p245 = por %p243, %p244
      %s247 = sadd.s32 %s246, 1
      %p250 = scmp.eq.s32.totalorder %s23, 1
      %p251 = scmp.ne.s32.totalorder %s246, %s248
      %p252 = scmp.eq.s32.totalorder %s23, 0
      %p253 = por %p251, %p252
      %p254 = scmp.ne.s32.totalorder %s246, %s248
      %p255 = scmp.eq.s32.totalorder %s28, 1
      %p256 = por %p254, %p255
      %p257 = scmp.ne.s32.totalorder %s248, %s249
      %p258 = scmp.eq.s32.totalorder %s28, 0
      %p259 = por %p257, %p258
      %p260 = scmp.ne.s32.totalorder %s248, %s249
      %p261 = scmp.eq.s32.totalorder %s29, 1
      %p262 = por %p260, %p261
      %p264 = scmp.ne.s32.totalorder %s249, %s263
      %p265 = scmp.eq.s32.totalorder %s29, 0
      %p266 = por %p264, %p265
      %s267 = ssub.s32 %s23, %s30
      %p268 = scmp.eq.s32.totalorder %s267, 0
      %s270 = sadd.s32 %s269, 1
      %s271 = scalar_select %p268, %s269, %s270
      %p274 = pneg %p268
      %p275 = scmp.eq.s32.totalorder %s23, 1
      %p276 = por %p274, %p275
      %p277 = scmp.ne.s32.totalorder %s269, %s272
      %p278 = scmp.eq.s32.totalorder %s23, 0
      %p279 = por %p277, %p278
      %p280 = scmp.ne.s32.totalorder %s269, %s272
      %p281 = scmp.eq.s32.totalorder %s28, 1
      %p282 = por %p280, %p281
      %p283 = scmp.ne.s32.totalorder %s272, %s273
      %p284 = scmp.eq.s32.totalorder %s28, 0
      %p285 = por %p283, %p284
      %p286 = scmp.ne.s32.totalorder %s272, %s273
      %p287 = scmp.eq.s32.totalorder %s29, 1
      %p288 = por %p286, %p287
      %p290 = scmp.ne.s32.totalorder %s273, %s289
      %p291 = scmp.eq.s32.totalorder %s29, 0
      %p292 = por %p290, %p291
      %p293 = scmp.le.s32.totalorder 1, %s23
      %p294 = scmp.lt.s32.totalorder %s23, 3
      %p295 = pnand %p293, %p294
      %p296 = pneg %p295
      // Predicated region
      $region9: #{tpu_custom_call.1} parent=5 // pred_check
        _
      $region10: #{tpu_custom_call.1} parent=5 // pred_check_branch
        %298 = sbr.rel (%p295) target = $region12
      $region11: #{tpu_custom_call.1} parent=5 // pred_region
        %s299 = ssub.s32 %s23, 1
        // Predicated region
        $region13: #{tpu_custom_call.1} parent=11 // pred_check
          %p300 = pneg %p70
        $region14: #{tpu_custom_call.1} parent=11 // pred_check_branch
          %302 = sbr.rel (%p300) target = $region16
        $region15: #{tpu_custom_call.1} parent=11 // pred_region
          _
        $region16: #{tpu_custom_call.1} parent=11 // pred_fallthru
          _
        // Predicated region
        $region17: #{tpu_custom_call.1} parent=11 // pred_check
          %p303 = pneg %p91
        $region18: #{tpu_custom_call.1} parent=11 // pred_check_branch
          %305 = sbr.rel (%p303) target = $region20
        $region19: #{tpu_custom_call.1} parent=11 // pred_region
          _
        $region20: #{tpu_custom_call.1} parent=11 // pred_fallthru
          _
        // Predicated region
        $region21: #{tpu_custom_call.1} parent=11 // pred_check
          %p306 = pneg %p112
        $region22: #{tpu_custom_call.1} parent=11 // pred_check_branch
          %308 = sbr.rel (%p306) target = $region24
        $region23: #{tpu_custom_call.1} parent=11 // pred_region
          %s310 = ssub.s32 5120, 5120
          %311 = vsyncadd [#allocation3], %s310
          %s312 = sshll.u32 [#allocation2], 4
          %s313 = int_to_ptr.vmem [resolvable:$true] %s312
          %318 = dma.hbm_to_vmem [thread:$0]  %s3, 5120, %s313, [#allocation3], 64, 64, 4
        $region24: #{tpu_custom_call.1} parent=11 // pred_fallthru
          _
        // Predicated region
        $region25: #{tpu_custom_call.1} parent=11 // pred_check
          %p319 = pneg %p133
        $region26: #{tpu_custom_call.1} parent=11 // pred_check_branch
          %321 = sbr.rel (%p319) target = $region28
        $region27: #{tpu_custom_call.1} parent=11 // pred_region
          _
        $region28: #{tpu_custom_call.1} parent=11 // pred_fallthru
          _
        // Predicated region
        $region29: #{tpu_custom_call.1} parent=11 // pred_check
          %p322 = pneg %p154
        $region30: #{tpu_custom_call.1} parent=11 // pred_check_branch
          %324 = sbr.rel (%p322) target = $region32
        $region31: #{tpu_custom_call.1} parent=11 // pred_region
          %s326 = ssub.s32 5120, 5120
          %327 = vsyncadd [#allocation6], %s326
          %s328 = sshll.u32 [#allocation5], 4
          %s329 = int_to_ptr.vmem [resolvable:$true] %s328
          %334 = dma.hbm_to_vmem [thread:$0]  %s5, 5120, %s329, [#allocation6], 64, 64, 4
        $region32: #{tpu_custom_call.1} parent=11 // pred_fallthru
          _
        // Predicated region
        $region33: #{tpu_custom_call.1} parent=11 // pred_check
          %p335 = pneg %p175
        $region34: #{tpu_custom_call.1} parent=11 // pred_check_branch
          %337 = sbr.rel (%p335) target = $region36
        $region35: #{tpu_custom_call.1} parent=11 // pred_region
          _
        $region36: #{tpu_custom_call.1} parent=11 // pred_fallthru
          _
        // Predicated region
        $region37: #{tpu_custom_call.1} parent=11 // pred_check
          %p338 = pneg %p196
        $region38: #{tpu_custom_call.1} parent=11 // pred_check_branch
          %340 = sbr.rel (%p338) target = $region40
        $region39: #{tpu_custom_call.1} parent=11 // pred_region
          %s342 = ssub.s32 5120, 5120
          %343 = vsyncadd [#allocation6], %s342
          %s344 = sshll.u32 [#allocation7], 4
          %s345 = int_to_ptr.vmem [resolvable:$true] %s344
          %350 = dma.hbm_to_vmem [thread:$0]  %s7, 5120, %s345, [#allocation6], 64, 64, 4
        $region40: #{tpu_custom_call.1} parent=11 // pred_fallthru
          _
        // Predicated region
        $region41: #{tpu_custom_call.1} parent=11 // pred_check
          %p351 = pneg %p217
        $region42: #{tpu_custom_call.1} parent=11 // pred_check_branch
          %353 = sbr.rel (%p351) target = $region44
        $region43: #{tpu_custom_call.1} parent=11 // pred_region
          _
        $region44: #{tpu_custom_call.1} parent=11 // pred_fallthru
          _
        // Predicated region
        $region45: #{tpu_custom_call.1} parent=11 // pred_check
          %p354 = pneg %p238
        $region46: #{tpu_custom_call.1} parent=11 // pred_check_branch
          %356 = sbr.rel (%p354) target = $region48
        $region47: #{tpu_custom_call.1} parent=11 // pred_region
          %s358 = ssub.s32 1024, 1024
          %359 = vsyncadd [#allocation9], %s358
          %s360 = sshll.u32 [#allocation8], 4
          %s361 = int_to_ptr.vmem [resolvable:$true] %s360
          %366 = dma.hbm_to_vmem [thread:$0]  %s9, 1024, %s361, [#allocation9], 64, 64, 4
        $region48: #{tpu_custom_call.1} parent=11 // pred_fallthru
          _
        // Predicated region
        $region49: #{tpu_custom_call.1} parent=11 // pred_check
          %p367 = pneg %p259
        $region50: #{tpu_custom_call.1} parent=11 // pred_check_branch
          %369 = sbr.rel (%p367) target = $region52
        $region51: #{tpu_custom_call.1} parent=11 // pred_region
          _
        $region52: #{tpu_custom_call.1} parent=11 // pred_fallthru
          _
      $region12: #{tpu_custom_call.1} parent=5 // pred_fallthru
        _
      %p370 = scmp.lt.s32.totalorder %s23, 2
      // Predicated region
      $region53: #{tpu_custom_call.1} parent=5 // pred_check
        %p371 = pneg %p370
      $region54: #{tpu_custom_call.1} parent=5 // pred_check_branch
        %373 = sbr.rel (%p371) target = $region56
      $region55: #{tpu_custom_call.1} parent=5 // pred_region
        // Predicated region
        $region57: #{tpu_custom_call.1} parent=55 // pred_check
          %p374 = pneg %p43
        $region58: #{tpu_custom_call.1} parent=55 // pred_check_branch
          %376 = sbr.rel (%p374) target = $region60
        $region59: #{tpu_custom_call.1} parent=55 // pred_region
          %p377 = scmp.lt.s32.totalorder %s23, 1
          %s378 = scalar_select %p377, %s23, 1
          %s379 = smul.addr %s378, 8
          %s380 = scalar_lea.vmem %s0, %s379
        $region60: #{tpu_custom_call.1} parent=55 // pred_fallthru
          _
      $region56: #{tpu_custom_call.1} parent=5 // pred_fallthru
        _
      %p381 = scmp.le.s32.totalorder 1, %s23
      %p382 = scmp.lt.s32.totalorder %s23, 3
      %p383 = pnand %p381, %p382
      %p384 = pneg %p383
      // Predicated region
      $region61: #{tpu_custom_call.1} parent=5 // pred_check
        _
      $region62: #{tpu_custom_call.1} parent=5 // pred_check_branch
        %386 = sbr.rel (%p383) target = $region64
      $region63: #{tpu_custom_call.1} parent=5 // pred_region
        %s387 = ssub.s32 %s23, 1
        // Predicated region
        $region65: #{tpu_custom_call.1} parent=63 // pred_check
          %p388 = pneg %p112
        $region66: #{tpu_custom_call.1} parent=63 // pred_check_branch
          %390 = sbr.rel (%p388) target = $region68
        $region67: #{tpu_custom_call.1} parent=63 // pred_region
          %391 = dma.done [#allocation3], 5120
        $region68: #{tpu_custom_call.1} parent=63 // pred_fallthru
          _
        // Predicated region
        $region69: #{tpu_custom_call.1} parent=63 // pred_check
          %p392 = pneg %p154
        $region70: #{tpu_custom_call.1} parent=63 // pred_check_branch
          %394 = sbr.rel (%p392) target = $region72
        $region71: #{tpu_custom_call.1} parent=63 // pred_region
          %395 = dma.done [#allocation6], 5120
        $region72: #{tpu_custom_call.1} parent=63 // pred_fallthru
          _
        // Predicated region
        $region73: #{tpu_custom_call.1} parent=63 // pred_check
          %p396 = pneg %p196
        $region74: #{tpu_custom_call.1} parent=63 // pred_check_branch
          %398 = sbr.rel (%p396) target = $region76
        $region75: #{tpu_custom_call.1} parent=63 // pred_region
          %399 = dma.done [#allocation6], 5120
        $region76: #{tpu_custom_call.1} parent=63 // pred_fallthru
          _
        // Predicated region
        $region77: #{tpu_custom_call.1} parent=63 // pred_check
          %p400 = pneg %p238
        $region78: #{tpu_custom_call.1} parent=63 // pred_check_branch
          %402 = sbr.rel (%p400) target = $region80
        $region79: #{tpu_custom_call.1} parent=63 // pred_region
          %403 = dma.done [#allocation9], 1024
        $region80: #{tpu_custom_call.1} parent=63 // pred_fallthru
          _
        %p404 = scmp.lt.s32.totalorder %s28, 1
        %s405 = scalar_select %p404, %s28, 1
        %s406 = smul.addr %s405, 8
        %s407 = scalar_lea.vmem %s0, %s406
        %p408 = pneg %p49
        %p409 = pneg %p46
        %p410 = pneg %p70
        %p411 = pneg %p67
        %p412 = pneg %p91
        %p413 = pneg %p88
        %p414 = pneg %p112
        %p415 = pneg %p109
        %p416 = pneg %p133
        %p417 = pneg %p130
        %p418 = pneg %p154
        %p419 = pneg %p151
        %p420 = pneg %p175
        %p421 = pneg %p172
        %p422 = pneg %p196
        %p423 = pneg %p193
        %p424 = pneg %p217
        %p425 = pneg %p214
        %p426 = pneg %p238
        %p427 = pneg %p235
        %p428 = pneg %p259
        %p429 = pneg %p256
        %p430 = pneg %p285
        %p431 = pneg %p282
        %s432 = sand.u32 %s272, 1
        %s433 = scalar_lea.sflag [#allocation4], %s432
        %s434 = sand.u32 %s272, 1
        %s435 = smul.addr %s434, 8
        %s436 = scalar_lea.vmem [#allocation10], %s435
        %p437 = scmp.lt.s32.totalorder %s28, 1
        %s438 = scalar_select %p437, %s28, 1
        %s439 = smul.addr %s438, 8
        %s440 = scalar_lea.vmem %s0, %s439
        %v442 = vld [vmem:[%s440] sm:$0xff]
        %v443 = vpack.c.bf16 %v442, %v442
        %v444 = vld [vmem:[%s1] sm:$0x3]
        %v445 = vld [vmem:[%s2] sm:$0x1]
        %v447 = vlaneseq
        %v448 = vshrl.u32 %v447, 7
        %v449 = vsub.s32 0, %v448
        %v450 = vrot.slane %v445, %v449
        %vm452 = vcmask 23552
        %v454 = vsel %vm452, %v443, 0
        %vm456 = vcmask 1040384
        %vm457 = vcmask 1041408
        %v458 = vsel %vm456, 4294967295, 65535
        %v459 = vsel %vm457, %v458, 0
        %v461 = vand.u32 %v444, %v459
        %463 = vmatprep.subr.bf16.mxu0 0
        %464 = vmatpush1.bf16.msra.mxu0 %v461
        %465 = vmatprep.subr.bf16.mxu0 0
        %466 = vmatpush1.bf16.msra.mxu0 0
        %467 = vmatprep.subr.bf16.mxu0 0
        %468 = vmatpush1.bf16.msra.mxu0 0
        %469 = vmatprep.subr.bf16.mxu0 0
        %470 = vmatpush1.bf16.msra.mxu0 0
        %471 = vmatprep.subr.bf16.mxu0 0
        %472 = vmatpush1.bf16.msra.mxu0 0
        %473 = vmatprep.subr.bf16.mxu0 0
        %474 = vmatpush1.bf16.msra.mxu0 0
        %475 = vmatprep.subr.bf16.mxu0 0
        %476 = vmatpush1.bf16.msra.mxu0 0
        %477 = vmatprep.subr.bf16.mxu0 0
        %478 = vmatpush1.bf16.msra.mxu0 0
        %479 = vmatprep.subr.bf16.mxu0 0
        %480 = vmatpush1.bf16.msra.mxu0 0
        %481 = vmatprep.subr.bf16.mxu0 0
        %482 = vmatpush1.bf16.msra.mxu0 0
        %483 = vmatprep.subr.bf16.mxu0 0
        %484 = vmatpush1.bf16.msra.mxu0 0
        %485 = vmatprep.subr.bf16.mxu0 0
        %486 = vmatpush1.bf16.msra.mxu0 0
        %487 = vmatprep.subr.bf16.mxu0 0
        %488 = vmatpush1.bf16.msra.mxu0 0
        %489 = vmatprep.subr.bf16.mxu0 0
        %490 = vmatpush1.bf16.msra.mxu0 0
        %491 = vmatprep.subr.bf16.mxu0 0
        %492 = vmatpush1.bf16.msra.mxu0 0
        %493 = vmatprep.subr.bf16.mxu0 0
        %494 = vmatpush1.bf16.msra.mxu0 0
        %495 = vmatprep.mubr.bf16.mxu0 0
        %496 = vmatmul.mubr.bf16.gmra.mrb[0].mxu0 %v454
        %v497 = vpop.f32.mrb[0].mxu0
        %v498 = vadd.f32 %v450, %v497
        %v499 = vpop.f32.mrb[0].mxu0
        %v500 = vpop.f32.mrb[0].mxu0
        %v501 = vpop.f32.mrb[0].mxu0
        %502 = vdwg.mxu0
        %v503 = vlaneseq
        %v504 = vshrl.u32 %v503, 7
        %vm505 = vcmp.lt.s32.totalorder %v504, 0
        %v506 = vsub.s32 0, %v504
        %v507 = vsel %vm505, %v506, %v504
        %v508 = vshrl.u32 %v507, 3
        %v509 = vand.u32 %v507, 7
        %v510 = vsub.s32 0, %v509
        %v511 = vsel %vm505, %v510, %v509
        %vm512 = vcmp.ne.s32.totalorder %v511, 0
        %vm513 = vcmp.lt.s32.totalorder %v511, 0
        %vm514 = vmand %vm513, %vm512
        %v515 = vadd.s32 %v511, 8
        %v516 = vsel %vm514, %v515, %v511
        %v517 = vrot.slane %v498, 6
        %v518 = vadd.s32 %v516, 4294967294
        %vm519 = vcmp.ge.s32.totalorder %v518, 0
        %vm520 = vcmp.lt.s32.totalorder %v518, 8
        %vm521 = vmand %vm519, %vm520
        %v522 = vsel %vm521, 1, 0
        %vm523 = vcmp.eq.s32.totalorder %v522, 1
        %v524 = vsel %vm523, %v517, 0.0
        %v525 = vrot.slane %v498, 7
        %v526 = vadd.s32 %v516, 4294967295
        %vm527 = vcmp.ge.s32.totalorder %v526, 0
        %vm528 = vcmp.lt.s32.totalorder %v526, 8
        %vm529 = vmand %vm527, %vm528
        %v530 = vsel %vm529, 1, 0
        %vm531 = vcmp.eq.s32.totalorder %v530, 1
        %v532 = vsel %vm531, %v525, 0.0
        %v533 = vrot.slane %v498, 1
        %v534 = vadd.s32 %v516, 1
        %vm535 = vcmp.ge.s32.totalorder %v534, 0
        %vm536 = vcmp.lt.s32.totalorder %v534, 8
        %vm537 = vmand %vm535, %vm536
        %v538 = vsel %vm537, 1, 0
        %vm539 = vcmp.eq.s32.totalorder %v538, 1
        %v540 = vsel %vm539, %v533, 0.0
        %v541 = vrot.slane %v498, 2
        %v542 = vadd.s32 %v516, 2
        %vm543 = vcmp.ge.s32.totalorder %v542, 0
        %vm544 = vcmp.lt.s32.totalorder %v542, 8
        %vm545 = vmand %vm543, %vm544
        %v546 = vsel %vm545, 1, 0
        %vm547 = vcmp.eq.s32.totalorder %v546, 1
        %v548 = vsel %vm547, %v541, 0.0
        %v549 = vpack.c.bf16 %v524, %v524
        %v550 = vpack.c.bf16 %v532, %v532
        %v551 = vpack.c.bf16 %v498, %v498
        %v552 = vpack.c.bf16 %v540, %v540
        %v553 = vpack.c.bf16 %v548, %v548
        %v554 = vld [vmem:[#allocation2] sm:$0xf]
        %v555 = vld [vmem:[#allocation2 + $0x4] sm:$0xf]
        %v556 = vld [vmem:[#allocation2 + $0x8] sm:$0xf]
        %v557 = vld [vmem:[#allocation2 + $0xc] sm:$0xf]
        %v558 = vld [vmem:[#allocation2 + $0x10] sm:$0xf]
        %v559 = vld [vmem:[#allocation2 + $0x14] sm:$0xf]
        %v560 = vld [vmem:[#allocation2 + $0x18] sm:$0xf]
        %v561 = vld [vmem:[#allocation2 + $0x1c] sm:$0xf]
        %v562 = vld [vmem:[#allocation2 + $0x20] sm:$0xf]
        %v563 = vld [vmem:[#allocation2 + $0x24] sm:$0xf]
        %v564 = vld [vmem:[#allocation2 + $0x28] sm:$0xf]
        %v565 = vld [vmem:[#allocation2 + $0x2c] sm:$0xf]
        %v566 = vld [vmem:[#allocation2 + $0x30] sm:$0xf]
        %v567 = vld [vmem:[#allocation2 + $0x34] sm:$0xf]
        %v568 = vld [vmem:[#allocation2 + $0x38] sm:$0xf]
        %v569 = vld [vmem:[#allocation2 + $0x3c] sm:$0xf]
        %v570 = vld [vmem:[#allocation2 + $0x40] sm:$0xf]
        %v571 = vld [vmem:[#allocation2 + $0x44] sm:$0xf]
        %v572 = vld [vmem:[#allocation2 + $0x48] sm:$0xf]
        %v573 = vld [vmem:[#allocation2 + $0x4c] sm:$0xf]
        %v574 = vld [vmem:[#allocation2 + $0x50] sm:$0xf]
        %v575 = vld [vmem:[#allocation2 + $0x54] sm:$0xf]
        %v576 = vld [vmem:[#allocation2 + $0x58] sm:$0xf]
        %v577 = vld [vmem:[#allocation2 + $0x5c] sm:$0xf]
        %v578 = vld [vmem:[#allocation2 + $0x60] sm:$0xf]
        %v579 = vld [vmem:[#allocation2 + $0x64] sm:$0xf]
        %v580 = vld [vmem:[#allocation2 + $0x68] sm:$0xf]
        %v581 = vld [vmem:[#allocation2 + $0x6c] sm:$0xf]
        %v582 = vld [vmem:[#allocation2 + $0x70] sm:$0xf]
        %v583 = vld [vmem:[#allocation2 + $0x74] sm:$0xf]
        %v584 = vld [vmem:[#allocation2 + $0x78] sm:$0xf]
        %v585 = vld [vmem:[#allocation2 + $0x7c] sm:$0xf]
        %v586 = vld [vmem:[#allocation2 + $0x80] sm:$0xf]
        %v587 = vld [vmem:[#allocation2 + $0x84] sm:$0xf]
        %v588 = vld [vmem:[#allocation2 + $0x88] sm:$0xf]
        %v589 = vld [vmem:[#allocation2 + $0x8c] sm:$0xf]
        %v590 = vld [vmem:[#allocation2 + $0x90] sm:$0xf]
        %v591 = vld [vmem:[#allocation2 + $0x94] sm:$0xf]
        %v592 = vld [vmem:[#allocation2 + $0x98] sm:$0xf]
        %v593 = vld [vmem:[#allocation2 + $0x9c] sm:$0xf]
        %v594 = vld [vmem:[#allocation2 + $0xa0] sm:$0xf]
        %v595 = vld [vmem:[#allocation2 + $0xa4] sm:$0xf]
        %v596 = vld [vmem:[#allocation2 + $0xa8] sm:$0xf]
        %v597 = vld [vmem:[#allocation2 + $0xac] sm:$0xf]
        %v598 = vld [vmem:[#allocation2 + $0xb0] sm:$0xf]
        %v599 = vld [vmem:[#allocation2 + $0xb4] sm:$0xf]
        %v600 = vld [vmem:[#allocation2 + $0xb8] sm:$0xf]
        %v601 = vld [vmem:[#allocation2 + $0xbc] sm:$0xf]
        %v602 = vld [vmem:[#allocation2 + $0xc0] sm:$0xf]
        %v603 = vld [vmem:[#allocation2 + $0xc4] sm:$0xf]
        %v604 = vld [vmem:[#allocation2 + $0xc8] sm:$0xf]
        %v605 = vld [vmem:[#allocation2 + $0xcc] sm:$0xf]
        %v606 = vld [vmem:[#allocation2 + $0xd0] sm:$0xf]
        %v607 = vld [vmem:[#allocation2 + $0xd4] sm:$0xf]
        %v608 = vld [vmem:[#allocation2 + $0xd8] sm:$0xf]
        %v609 = vld [vmem:[#allocation2 + $0xdc] sm:$0xf]
        %v610 = vld [vmem:[#allocation2 + $0xe0] sm:$0xf]
        %v611 = vld [vmem:[#allocation2 + $0xe4] sm:$0xf]
        %v612 = vld [vmem:[#allocation2 + $0xe8] sm:$0xf]
        %v613 = vld [vmem:[#allocation2 + $0xec] sm:$0xf]
        %v614 = vld [vmem:[#allocation2 + $0xf0] sm:$0xf]
        %v615 = vld [vmem:[#allocation2 + $0xf4] sm:$0xf]
        %v616 = vld [vmem:[#allocation2 + $0xf8] sm:$0xf]
        %v617 = vld [vmem:[#allocation2 + $0xfc] sm:$0xf]
        %v618 = vld [vmem:[#allocation2 + $0x100] sm:$0xf]
        %v619 = vld [vmem:[#allocation2 + $0x104] sm:$0xf]
        %v620 = vld [vmem:[#allocation2 + $0x108] sm:$0xf]
        %v621 = vld [vmem:[#allocation2 + $0x10c] sm:$0xf]
        %v622 = vld [vmem:[#allocation2 + $0x110] sm:$0xf]
        %v623 = vld [vmem:[#allocation2 + $0x114] sm:$0xf]
        %v624 = vld [vmem:[#allocation2 + $0x118] sm:$0xf]
        %v625 = vld [vmem:[#allocation2 + $0x11c] sm:$0xf]
        %v626 = vld [vmem:[#allocation2 + $0x120] sm:$0xf]
        %v627 = vld [vmem:[#allocation2 + $0x124] sm:$0xf]
        %v628 = vld [vmem:[#allocation2 + $0x128] sm:$0xf]
        %v629 = vld [vmem:[#allocation2 + $0x12c] sm:$0xf]
        %v630 = vld [vmem:[#allocation2 + $0x130] sm:$0xf]
        %v631 = vld [vmem:[#allocation2 + $0x134] sm:$0xf]
        %v632 = vld [vmem:[#allocation2 + $0x138] sm:$0xf]
        %v633 = vld [vmem:[#allocation2 + $0x13c] sm:$0xf]
        %v634 = vld [vmem:[%s4] sm:$0x1]
        %v636 = vlaneseq
        %v637 = vshrl.u32 %v636, 7
        %v638 = vsub.s32 0, %v637
        %v639 = vrot.slane %v634, %v638
        %v721 = vunpack.c.l.b16 %v554
        %v722 = vunpack.c.l.b16 %v555
        %v723 = vunpack.c.l.b16 %v556
        %v724 = vunpack.c.l.b16 %v557
        %v725 = vunpack.c.l.b16 %v558
        %v726 = vunpack.c.l.b16 %v559
        %v727 = vunpack.c.l.b16 %v560
        %v728 = vunpack.c.l.b16 %v561
        %v729 = vunpack.c.l.b16 %v562
        %v730 = vunpack.c.l.b16 %v563
        %v731 = vunpack.c.l.b16 %v564
        %v732 = vunpack.c.l.b16 %v565
        %v733 = vunpack.c.l.b16 %v566
        %v734 = vunpack.c.l.b16 %v567
        %v735 = vunpack.c.l.b16 %v568
        %v736 = vunpack.c.l.b16 %v569
        %v737 = vunpack.c.l.b16 %v570
        %v738 = vunpack.c.l.b16 %v571
        %v739 = vunpack.c.l.b16 %v572
        %v740 = vunpack.c.l.b16 %v573
        %v741 = vunpack.c.l.b16 %v574
        %v742 = vunpack.c.l.b16 %v575
        %v743 = vunpack.c.l.b16 %v576
        %v744 = vunpack.c.l.b16 %v577
        %v745 = vunpack.c.l.b16 %v578
        %v746 = vunpack.c.l.b16 %v579
        %v747 = vunpack.c.l.b16 %v580
        %v748 = vunpack.c.l.b16 %v581
        %v749 = vunpack.c.l.b16 %v582
        %v750 = vunpack.c.l.b16 %v583
        %v751 = vunpack.c.l.b16 %v584
        %v752 = vunpack.c.l.b16 %v585
        %v753 = vunpack.c.l.b16 %v586
        %v754 = vunpack.c.l.b16 %v587
        %v755 = vunpack.c.l.b16 %v588
        %v756 = vunpack.c.l.b16 %v589
        %v757 = vunpack.c.l.b16 %v590
        %v758 = vunpack.c.l.b16 %v591
        %v759 = vunpack.c.l.b16 %v592
        %v760 = vunpack.c.l.b16 %v593
        %v761 = vunpack.c.l.b16 %v594
        %v762 = vunpack.c.l.b16 %v595
        %v763 = vunpack.c.l.b16 %v596
        %v764 = vunpack.c.l.b16 %v597
        %v765 = vunpack.c.l.b16 %v598
        %v766 = vunpack.c.l.b16 %v599
        %v767 = vunpack.c.l.b16 %v600
        %v768 = vunpack.c.l.b16 %v601
        %v769 = vunpack.c.l.b16 %v602
        %v770 = vunpack.c.l.b16 %v603
        %v771 = vunpack.c.l.b16 %v604
        %v772 = vunpack.c.l.b16 %v605
        %v773 = vunpack.c.l.b16 %v606
        %v774 = vunpack.c.l.b16 %v607
        %v775 = vunpack.c.l.b16 %v608
        %v776 = vunpack.c.l.b16 %v609
        %v777 = vunpack.c.l.b16 %v610
        %v778 = vunpack.c.l.b16 %v611
        %v779 = vunpack.c.l.b16 %v612
        %v780 = vunpack.c.l.b16 %v613
        %v781 = vunpack.c.l.b16 %v614
        %v782 = vunpack.c.l.b16 %v615
        %v783 = vunpack.c.l.b16 %v616
        %v784 = vunpack.c.l.b16 %v617
        %v785 = vunpack.c.l.b16 %v618
        %v786 = vunpack.c.l.b16 %v619
        %v787 = vunpack.c.l.b16 %v620
        %v788 = vunpack.c.l.b16 %v621
        %v789 = vunpack.c.l.b16 %v622
        %v790 = vunpack.c.l.b16 %v623
        %v791 = vunpack.c.l.b16 %v624
        %v792 = vunpack.c.l.b16 %v625
        %v793 = vunpack.c.l.b16 %v626
        %v794 = vunpack.c.l.b16 %v627
        %v795 = vunpack.c.l.b16 %v628
        %v796 = vunpack.c.l.b16 %v629
        %v797 = vunpack.c.l.b16 %v630
        %v798 = vunpack.c.l.b16 %v631
        %v799 = vunpack.c.l.b16 %v632
        %v800 = vunpack.c.l.b16 %v633
        %v801 = vpack.c.b16 %v722, %v721
        %v802 = vpack.c.b16 %v724, %v723
        %v803 = vpack.c.b16 %v726, %v725
        %v804 = vpack.c.b16 %v728, %v727
        %v805 = vpack.c.b16 %v730, %v729
        %v806 = vpack.c.b16 %v732, %v731
        %v807 = vpack.c.b16 %v734, %v733
        %v808 = vpack.c.b16 %v736, %v735
        %v809 = vpack.c.b16 %v738, %v737
        %v810 = vpack.c.b16 %v740, %v739
        %v811 = vpack.c.b16 %v742, %v741
        %v812 = vpack.c.b16 %v744, %v743
        %v813 = vpack.c.b16 %v746, %v745
        %v814 = vpack.c.b16 %v748, %v747
        %v815 = vpack.c.b16 %v750, %v749
        %v816 = vpack.c.b16 %v752, %v751
        %v817 = vpack.c.b16 %v754, %v753
        %v818 = vpack.c.b16 %v756, %v755
        %v819 = vpack.c.b16 %v758, %v757
        %v820 = vpack.c.b16 %v760, %v759
        %v821 = vpack.c.b16 %v762, %v761
        %v822 = vpack.c.b16 %v764, %v763
        %v823 = vpack.c.b16 %v766, %v765
        %v824 = vpack.c.b16 %v768, %v767
        %v825 = vpack.c.b16 %v770, %v769
        %v826 = vpack.c.b16 %v772, %v771
        %v827 = vpack.c.b16 %v774, %v773
        %v828 = vpack.c.b16 %v776, %v775
        %v829 = vpack.c.b16 %v778, %v777
        %v830 = vpack.c.b16 %v780, %v779
        %v831 = vpack.c.b16 %v782, %v781
        %v832 = vpack.c.b16 %v784, %v783
        %v833 = vpack.c.b16 %v786, %v785
        %v834 = vpack.c.b16 %v788, %v787
        %v835 = vpack.c.b16 %v790, %v789
        %v836 = vpack.c.b16 %v792, %v791
        %v837 = vpack.c.b16 %v794, %v793
        %v838 = vpack.c.b16 %v796, %v795
        %v839 = vpack.c.b16 %v798, %v797
        %v840 = vpack.c.b16 %v800, %v799
        %881 = vmatprep.subr.bf16.mxu0 0
        %882 = vmatpush1.bf16.msra.mxu0 %v801
        %883 = vmatprep.subr.bf16.mxu0 0
        %884 = vmatpush1.bf16.msra.mxu0 %v802
        %885 = vmatprep.subr.bf16.mxu0 0
        %886 = vmatpush1.bf16.msra.mxu0 %v803
        %887 = vmatprep.subr.bf16.mxu0 0
        %888 = vmatpush1.bf16.msra.mxu0 %v804
        %889 = vmatprep.subr.bf16.mxu0 0
        %890 = vmatpush1.bf16.msra.mxu0 %v805
        %891 = vmatprep.subr.bf16.mxu0 0
        %892 = vmatpush1.bf16.msra.mxu0 %v806
        %893 = vmatprep.subr.bf16.mxu0 0
        %894 = vmatpush1.bf16.msra.mxu0 %v807
        %895 = vmatprep.subr.bf16.mxu0 0
        %896 = vmatpush1.bf16.msra.mxu0 %v808
        %897 = vmatprep.subr.bf16.mxu0 0
        %898 = vmatpush1.bf16.msra.mxu0 %v809
        %899 = vmatprep.subr.bf16.mxu0 0
        %900 = vmatpush1.bf16.msra.mxu0 %v810
        %901 = vmatprep.subr.bf16.mxu0 0
        %902 = vmatpush1.bf16.msra.mxu0 %v811
        %903 = vmatprep.subr.bf16.mxu0 0
        %904 = vmatpush1.bf16.msra.mxu0 %v812
        %905 = vmatprep.subr.bf16.mxu0 0
        %906 = vmatpush1.bf16.msra.mxu0 %v813
        %907 = vmatprep.subr.bf16.mxu0 0
        %908 = vmatpush1.bf16.msra.mxu0 %v814
        %909 = vmatprep.subr.bf16.mxu0 0
        %910 = vmatpush1.bf16.msra.mxu0 %v815
        %911 = vmatprep.subr.bf16.mxu0 0
        %912 = vmatpush1.bf16.msra.mxu0 %v816
        %913 = vmatprep.mubr.bf16.mxu0 %v550
        %914 = vmatmul.mubr.bf16.gmra.mrb[0].mxu0 %v549
        %v915 = vpop.f32.mrb[0].mxu0
        %v916 = vadd.f32 %v639, %v915
        %v917 = vpop.f32.mrb[0].mxu0
        %v918 = vpop.f32.mrb[0].mxu0
        %v919 = vpop.f32.mrb[0].mxu0
        %920 = vdwg.mxu0
        %921 = vmatprep.subr.bf16.mxu0 0
        %922 = vmatpush1.bf16.msra.mxu0 %v817
        %923 = vmatprep.subr.bf16.mxu0 0
        %924 = vmatpush1.bf16.msra.mxu0 %v818
        %925 = vmatprep.subr.bf16.mxu0 0
        %926 = vmatpush1.bf16.msra.mxu0 %v819
        %927 = vmatprep.subr.bf16.mxu0 0
        %928 = vmatpush1.bf16.msra.mxu0 %v820
        %929 = vmatprep.subr.bf16.mxu0 0
        %930 = vmatpush1.bf16.msra.mxu0 %v821
        %931 = vmatprep.subr.bf16.mxu0 0
        %932 = vmatpush1.bf16.msra.mxu0 %v822
        %933 = vmatprep.subr.bf16.mxu0 0
        %934 = vmatpush1.bf16.msra.mxu0 %v823
        %935 = vmatprep.subr.bf16.mxu0 0
        %936 = vmatpush1.bf16.msra.mxu0 %v824
        %937 = vmatprep.subr.bf16.mxu0 0
        %938 = vmatpush1.bf16.msra.mxu0 %v825
        %939 = vmatprep.subr.bf16.mxu0 0
        %940 = vmatpush1.bf16.msra.mxu0 %v826
        %941 = vmatprep.subr.bf16.mxu0 0
        %942 = vmatpush1.bf16.msra.mxu0 %v827
        %943 = vmatprep.subr.bf16.mxu0 0
        %944 = vmatpush1.bf16.msra.mxu0 %v828
        %945 = vmatprep.subr.bf16.mxu0 0
        %946 = vmatpush1.bf16.msra.mxu0 %v829
        %947 = vmatprep.subr.bf16.mxu0 0
        %948 = vmatpush1.bf16.msra.mxu0 %v830
        %949 = vmatprep.subr.bf16.mxu0 0
        %950 = vmatpush1.bf16.msra.mxu0 %v831
        %951 = vmatprep.subr.bf16.mxu0 0
        %952 = vmatpush1.bf16.msra.mxu0 %v832
        %953 = vmatprep.mubr.bf16.mxu0 %v552
        %954 = vmatmul.mubr.bf16.gmra.mrb[0].mxu0 %v551
        %v955 = vpop.f32.mrb[0].mxu0
        %v956 = vadd.f32 %v916, %v955
        %v957 = vpop.f32.mrb[0].mxu0
        %v958 = vpop.f32.mrb[0].mxu0
        %v959 = vpop.f32.mrb[0].mxu0
        %960 = vdwg.mxu0
        %961 = vmatprep.subr.bf16.mxu0 0
        %962 = vmatpush1.bf16.msra.mxu0 %v833
        %963 = vmatprep.subr.bf16.mxu0 0
        %964 = vmatpush1.bf16.msra.mxu0 %v834
        %965 = vmatprep.subr.bf16.mxu0 0
        %966 = vmatpush1.bf16.msra.mxu0 %v835
        %967 = vmatprep.subr.bf16.mxu0 0
        %968 = vmatpush1.bf16.msra.mxu0 %v836
        %969 = vmatprep.subr.bf16.mxu0 0
        %970 = vmatpush1.bf16.msra.mxu0 %v837
        %971 = vmatprep.subr.bf16.mxu0 0
        %972 = vmatpush1.bf16.msra.mxu0 %v838
        %973 = vmatprep.subr.bf16.mxu0 0
        %974 = vmatpush1.bf16.msra.mxu0 %v839
        %975 = vmatprep.subr.bf16.mxu0 0
        %976 = vmatpush1.bf16.msra.mxu0 %v840
        %977 = vmatprep.subr.bf16.mxu0 0
        %978 = vmatpush1.bf16.msra.mxu0 0
        %979 = vmatprep.subr.bf16.mxu0 0
        %980 = vmatpush1.bf16.msra.mxu0 0
        %981 = vmatprep.subr.bf16.mxu0 0
        %982 = vmatpush1.bf16.msra.mxu0 0
        %983 = vmatprep.subr.bf16.mxu0 0
        %984 = vmatpush1.bf16.msra.mxu0 0
        %985 = vmatprep.subr.bf16.mxu0 0
        %986 = vmatpush1.bf16.msra.mxu0 0
        %987 = vmatprep.subr.bf16.mxu0 0
        %988 = vmatpush1.bf16.msra.mxu0 0
        %989 = vmatprep.subr.bf16.mxu0 0
        %990 = vmatpush1.bf16.msra.mxu0 0
        %991 = vmatprep.subr.bf16.mxu0 0
        %992 = vmatpush1.bf16.msra.mxu0 0
        %993 = vmatprep.mubr.bf16.mxu0 0
        %994 = vmatmul.mubr.bf16.gmra.mrb[0].mxu0 %v553
        %v995 = vpop.f32.mrb[0].mxu0
        %v996 = vadd.f32 %v956, %v995
        %v997 = vpop.f32.mrb[0].mxu0
        %v998 = vpop.f32.mrb[0].mxu0
        %v999 = vpop.f32.mrb[0].mxu0
        %1000 = vdwg.mxu0
        %v1001 = vmax.f32 %v996, 0.0
        %v1002 = vrot.slane %v1001, 4
        %v1003 = vadd.s32 %v516, 4294967292
        %vm1004 = vcmp.ge.s32.totalorder %v1003, 0
        %vm1005 = vcmp.lt.s32.totalorder %v1003, 8
        %vm1006 = vmand %vm1004, %vm1005
        %v1007 = vsel %vm1006, 1, 0
        %vm1008 = vcmp.eq.s32.totalorder %v1007, 1
        %v1009 = vsel %vm1008, %v1002, 0.0
        %v1010 = vrot.slane %v1001, 6
        %v1011 = vsel %vm523, %v1010, 0.0
        %v1012 = vrot.slane %v1001, 2
        %v1013 = vsel %vm547, %v1012, 0.0
        %v1014 = vadd.s32 %v516, 4
        %vm1015 = vcmp.ge.s32.totalorder %v1014, 0
        %vm1016 = vcmp.lt.s32.totalorder %v1014, 8
        %vm1017 = vmand %vm1015, %vm1016
        %v1018 = vsel %vm1017, 1, 0
        %vm1019 = vcmp.eq.s32.totalorder %v1018, 1
        %v1020 = vsel %vm1019, %v1002, 0.0
        %v1021 = vpack.c.bf16 %v1009, %v1009
        %v1022 = vpack.c.bf16 %v1011, %v1011
        %v1023 = vpack.c.bf16 %v1001, %v1001
        %v1024 = vpack.c.bf16 %v1013, %v1013
        %v1025 = vpack.c.bf16 %v1020, %v1020
        %v1026 = vld [vmem:[#allocation5] sm:$0xf]
        %v1027 = vld [vmem:[#allocation5 + $0x4] sm:$0xf]
        %v1028 = vld [vmem:[#allocation5 + $0x8] sm:$0xf]
        %v1029 = vld [vmem:[#allocation5 + $0xc] sm:$0xf]
        %v1030 = vld [vmem:[#allocation5 + $0x10] sm:$0xf]
        %v1031 = vld [vmem:[#allocation5 + $0x14] sm:$0xf]
        %v1032 = vld [vmem:[#allocation5 + $0x18] sm:$0xf]
        %v1033 = vld [vmem:[#allocation5 + $0x1c] sm:$0xf]
        %v1034 = vld [vmem:[#allocation5 + $0x20] sm:$0xf]
        %v1035 = vld [vmem:[#allocation5 + $0x24] sm:$0xf]
        %v1036 = vld [vmem:[#allocation5 + $0x28] sm:$0xf]
        %v1037 = vld [vmem:[#allocation5 + $0x2c] sm:$0xf]
        %v1038 = vld [vmem:[#allocation5 + $0x30] sm:$0xf]
        %v1039 = vld [vmem:[#allocation5 + $0x34] sm:$0xf]
        %v1040 = vld [vmem:[#allocation5 + $0x38] sm:$0xf]
        %v1041 = vld [vmem:[#allocation5 + $0x3c] sm:$0xf]
        %v1042 = vld [vmem:[#allocation5 + $0x40] sm:$0xf]
        %v1043 = vld [vmem:[#allocation5 + $0x44] sm:$0xf]
        %v1044 = vld [vmem:[#allocation5 + $0x48] sm:$0xf]
        %v1045 = vld [vmem:[#allocation5 + $0x4c] sm:$0xf]
        %v1046 = vld [vmem:[#allocation5 + $0x50] sm:$0xf]
        %v1047 = vld [vmem:[#allocation5 + $0x54] sm:$0xf]
        %v1048 = vld [vmem:[#allocation5 + $0x58] sm:$0xf]
        %v1049 = vld [vmem:[#allocation5 + $0x5c] sm:$0xf]
        %v1050 = vld [vmem:[#allocation5 + $0x60] sm:$0xf]
        %v1051 = vld [vmem:[#allocation5 + $0x64] sm:$0xf]
        %v1052 = vld [vmem:[#allocation5 + $0x68] sm:$0xf]
        %v1053 = vld [vmem:[#allocation5 + $0x6c] sm:$0xf]
        %v1054 = vld [vmem:[#allocation5 + $0x70] sm:$0xf]
        %v1055 = vld [vmem:[#allocation5 + $0x74] sm:$0xf]
        %v1056 = vld [vmem:[#allocation5 + $0x78] sm:$0xf]
        %v1057 = vld [vmem:[#allocation5 + $0x7c] sm:$0xf]
        %v1058 = vld [vmem:[#allocation5 + $0x80] sm:$0xf]
        %v1059 = vld [vmem:[#allocation5 + $0x84] sm:$0xf]
        %v1060 = vld [vmem:[#allocation5 + $0x88] sm:$0xf]
        %v1061 = vld [vmem:[#allocation5 + $0x8c] sm:$0xf]
        %v1062 = vld [vmem:[#allocation5 + $0x90] sm:$0xf]
        %v1063 = vld [vmem:[#allocation5 + $0x94] sm:$0xf]
        %v1064 = vld [vmem:[#allocation5 + $0x98] sm:$0xf]
        %v1065 = vld [vmem:[#allocation5 + $0x9c] sm:$0xf]
        %v1066 = vld [vmem:[#allocation5 + $0xa0] sm:$0xf]
        %v1067 = vld [vmem:[#allocation5 + $0xa4] sm:$0xf]
        %v1068 = vld [vmem:[#allocation5 + $0xa8] sm:$0xf]
        %v1069 = vld [vmem:[#allocation5 + $0xac] sm:$0xf]
        %v1070 = vld [vmem:[#allocation5 + $0xb0] sm:$0xf]
        %v1071 = vld [vmem:[#allocation5 + $0xb4] sm:$0xf]
        %v1072 = vld [vmem:[#allocation5 + $0xb8] sm:$0xf]
        %v1073 = vld [vmem:[#allocation5 + $0xbc] sm:$0xf]
        %v1074 = vld [vmem:[#allocation5 + $0xc0] sm:$0xf]
        %v1075 = vld [vmem:[#allocation5 + $0xc4] sm:$0xf]
        %v1076 = vld [vmem:[#allocation5 + $0xc8] sm:$0xf]
        %v1077 = vld [vmem:[#allocation5 + $0xcc] sm:$0xf]
        %v1078 = vld [vmem:[#allocation5 + $0xd0] sm:$0xf]
        %v1079 = vld [vmem:[#allocation5 + $0xd4] sm:$0xf]
        %v1080 = vld [vmem:[#allocation5 + $0xd8] sm:$0xf]
        %v1081 = vld [vmem:[#allocation5 + $0xdc] sm:$0xf]
        %v1082 = vld [vmem:[#allocation5 + $0xe0] sm:$0xf]
        %v1083 = vld [vmem:[#allocation5 + $0xe4] sm:$0xf]
        %v1084 = vld [vmem:[#allocation5 + $0xe8] sm:$0xf]
        %v1085 = vld [vmem:[#allocation5 + $0xec] sm:$0xf]
        %v1086 = vld [vmem:[#allocation5 + $0xf0] sm:$0xf]
        %v1087 = vld [vmem:[#allocation5 + $0xf4] sm:$0xf]
        %v1088 = vld [vmem:[#allocation5 + $0xf8] sm:$0xf]
        %v1089 = vld [vmem:[#allocation5 + $0xfc] sm:$0xf]
        %v1090 = vld [vmem:[#allocation5 + $0x100] sm:$0xf]
        %v1091 = vld [vmem:[#allocation5 + $0x104] sm:$0xf]
        %v1092 = vld [vmem:[#allocation5 + $0x108] sm:$0xf]
        %v1093 = vld [vmem:[#allocation5 + $0x10c] sm:$0xf]
        %v1094 = vld [vmem:[#allocation5 + $0x110] sm:$0xf]
        %v1095 = vld [vmem:[#allocation5 + $0x114] sm:$0xf]
        %v1096 = vld [vmem:[#allocation5 + $0x118] sm:$0xf]
        %v1097 = vld [vmem:[#allocation5 + $0x11c] sm:$0xf]
        %v1098 = vld [vmem:[#allocation5 + $0x120] sm:$0xf]
        %v1099 = vld [vmem:[#allocation5 + $0x124] sm:$0xf]
        %v1100 = vld [vmem:[#allocation5 + $0x128] sm:$0xf]
        %v1101 = vld [vmem:[#allocation5 + $0x12c] sm:$0xf]
        %v1102 = vld [vmem:[#allocation5 + $0x130] sm:$0xf]
        %v1103 = vld [vmem:[#allocation5 + $0x134] sm:$0xf]
        %v1104 = vld [vmem:[#allocation5 + $0x138] sm:$0xf]
        %v1105 = vld [vmem:[#allocation5 + $0x13c] sm:$0xf]
        %v1106 = vld [vmem:[%s6] sm:$0x1]
        %v1108 = vlaneseq
        %v1109 = vshrl.u32 %v1108, 7
        %v1110 = vsub.s32 0, %v1109
        %v1111 = vrot.slane %v1106, %v1110
        %v1193 = vunpack.c.l.b16 %v1026
        %v1194 = vunpack.c.l.b16 %v1027
        %v1195 = vunpack.c.l.b16 %v1028
        %v1196 = vunpack.c.l.b16 %v1029
        %v1197 = vunpack.c.l.b16 %v1030
        %v1198 = vunpack.c.l.b16 %v1031
        %v1199 = vunpack.c.l.b16 %v1032
        %v1200 = vunpack.c.l.b16 %v1033
        %v1201 = vunpack.c.l.b16 %v1034
        %v1202 = vunpack.c.l.b16 %v1035
        %v1203 = vunpack.c.l.b16 %v1036
        %v1204 = vunpack.c.l.b16 %v1037
        %v1205 = vunpack.c.l.b16 %v1038
        %v1206 = vunpack.c.l.b16 %v1039
        %v1207 = vunpack.c.l.b16 %v1040
        %v1208 = vunpack.c.l.b16 %v1041
        %v1209 = vunpack.c.l.b16 %v1042
        %v1210 = vunpack.c.l.b16 %v1043
        %v1211 = vunpack.c.l.b16 %v1044
        %v1212 = vunpack.c.l.b16 %v1045
        %v1213 = vunpack.c.l.b16 %v1046
        %v1214 = vunpack.c.l.b16 %v1047
        %v1215 = vunpack.c.l.b16 %v1048
        %v1216 = vunpack.c.l.b16 %v1049
        %v1217 = vunpack.c.l.b16 %v1050
        %v1218 = vunpack.c.l.b16 %v1051
        %v1219 = vunpack.c.l.b16 %v1052
        %v1220 = vunpack.c.l.b16 %v1053
        %v1221 = vunpack.c.l.b16 %v1054
        %v1222 = vunpack.c.l.b16 %v1055
        %v1223 = vunpack.c.l.b16 %v1056
        %v1224 = vunpack.c.l.b16 %v1057
        %v1225 = vunpack.c.l.b16 %v1058
        %v1226 = vunpack.c.l.b16 %v1059
        %v1227 = vunpack.c.l.b16 %v1060
        %v1228 = vunpack.c.l.b16 %v1061
        %v1229 = vunpack.c.l.b16 %v1062
        %v1230 = vunpack.c.l.b16 %v1063
        %v1231 = vunpack.c.l.b16 %v1064
        %v1232 = vunpack.c.l.b16 %v1065
        %v1233 = vunpack.c.l.b16 %v1066
        %v1234 = vunpack.c.l.b16 %v1067
        %v1235 = vunpack.c.l.b16 %v1068
        %v1236 = vunpack.c.l.b16 %v1069
        %v1237 = vunpack.c.l.b16 %v1070
        %v1238 = vunpack.c.l.b16 %v1071
        %v1239 = vunpack.c.l.b16 %v1072
        %v1240 = vunpack.c.l.b16 %v1073
        %v1241 = vunpack.c.l.b16 %v1074
        %v1242 = vunpack.c.l.b16 %v1075
        %v1243 = vunpack.c.l.b16 %v1076
        %v1244 = vunpack.c.l.b16 %v1077
        %v1245 = vunpack.c.l.b16 %v1078
        %v1246 = vunpack.c.l.b16 %v1079
        %v1247 = vunpack.c.l.b16 %v1080
        %v1248 = vunpack.c.l.b16 %v1081
        %v1249 = vunpack.c.l.b16 %v1082
        %v1250 = vunpack.c.l.b16 %v1083
        %v1251 = vunpack.c.l.b16 %v1084
        %v1252 = vunpack.c.l.b16 %v1085
        %v1253 = vunpack.c.l.b16 %v1086
        %v1254 = vunpack.c.l.b16 %v1087
        %v1255 = vunpack.c.l.b16 %v1088
        %v1256 = vunpack.c.l.b16 %v1089
        %v1257 = vunpack.c.l.b16 %v1090
        %v1258 = vunpack.c.l.b16 %v1091
        %v1259 = vunpack.c.l.b16 %v1092
        %v1260 = vunpack.c.l.b16 %v1093
        %v1261 = vunpack.c.l.b16 %v1094
        %v1262 = vunpack.c.l.b16 %v1095
        %v1263 = vunpack.c.l.b16 %v1096
        %v1264 = vunpack.c.l.b16 %v1097
        %v1265 = vunpack.c.l.b16 %v1098
        %v1266 = vunpack.c.l.b16 %v1099
        %v1267 = vunpack.c.l.b16 %v1100
        %v1268 = vunpack.c.l.b16 %v1101
        %v1269 = vunpack.c.l.b16 %v1102
        %v1270 = vunpack.c.l.b16 %v1103
        %v1271 = vunpack.c.l.b16 %v1104
        %v1272 = vunpack.c.l.b16 %v1105
        %v1273 = vpack.c.b16 %v1194, %v1193
        %v1274 = vpack.c.b16 %v1196, %v1195
        %v1275 = vpack.c.b16 %v1198, %v1197
        %v1276 = vpack.c.b16 %v1200, %v1199
        %v1277 = vpack.c.b16 %v1202, %v1201
        %v1278 = vpack.c.b16 %v1204, %v1203
        %v1279 = vpack.c.b16 %v1206, %v1205
        %v1280 = vpack.c.b16 %v1208, %v1207
        %v1281 = vpack.c.b16 %v1210, %v1209
        %v1282 = vpack.c.b16 %v1212, %v1211
        %v1283 = vpack.c.b16 %v1214, %v1213
        %v1284 = vpack.c.b16 %v1216, %v1215
        %v1285 = vpack.c.b16 %v1218, %v1217
        %v1286 = vpack.c.b16 %v1220, %v1219
        %v1287 = vpack.c.b16 %v1222, %v1221
        %v1288 = vpack.c.b16 %v1224, %v1223
        %v1289 = vpack.c.b16 %v1226, %v1225
        %v1290 = vpack.c.b16 %v1228, %v1227
        %v1291 = vpack.c.b16 %v1230, %v1229
        %v1292 = vpack.c.b16 %v1232, %v1231
        %v1293 = vpack.c.b16 %v1234, %v1233
        %v1294 = vpack.c.b16 %v1236, %v1235
        %v1295 = vpack.c.b16 %v1238, %v1237
        %v1296 = vpack.c.b16 %v1240, %v1239
        %v1297 = vpack.c.b16 %v1242, %v1241
        %v1298 = vpack.c.b16 %v1244, %v1243
        %v1299 = vpack.c.b16 %v1246, %v1245
        %v1300 = vpack.c.b16 %v1248, %v1247
        %v1301 = vpack.c.b16 %v1250, %v1249
        %v1302 = vpack.c.b16 %v1252, %v1251
        %v1303 = vpack.c.b16 %v1254, %v1253
        %v1304 = vpack.c.b16 %v1256, %v1255
        %v1305 = vpack.c.b16 %v1258, %v1257
        %v1306 = vpack.c.b16 %v1260, %v1259
        %v1307 = vpack.c.b16 %v1262, %v1261
        %v1308 = vpack.c.b16 %v1264, %v1263
        %v1309 = vpack.c.b16 %v1266, %v1265
        %v1310 = vpack.c.b16 %v1268, %v1267
        %v1311 = vpack.c.b16 %v1270, %v1269
        %v1312 = vpack.c.b16 %v1272, %v1271
        %1353 = vmatprep.subr.bf16.mxu0 0
        %1354 = vmatpush1.bf16.msra.mxu0 %v1273
        %1355 = vmatprep.subr.bf16.mxu0 0
        %1356 = vmatpush1.bf16.msra.mxu0 %v1274
        %1357 = vmatprep.subr.bf16.mxu0 0
        %1358 = vmatpush1.bf16.msra.mxu0 %v1275
        %1359 = vmatprep.subr.bf16.mxu0 0
        %1360 = vmatpush1.bf16.msra.mxu0 %v1276
        %1361 = vmatprep.subr.bf16.mxu0 0
        %1362 = vmatpush1.bf16.msra.mxu0 %v1277
        %1363 = vmatprep.subr.bf16.mxu0 0
        %1364 = vmatpush1.bf16.msra.mxu0 %v1278
        %1365 = vmatprep.subr.bf16.mxu0 0
        %1366 = vmatpush1.bf16.msra.mxu0 %v1279
        %1367 = vmatprep.subr.bf16.mxu0 0
        %1368 = vmatpush1.bf16.msra.mxu0 %v1280
        %1369 = vmatprep.subr.bf16.mxu0 0
        %1370 = vmatpush1.bf16.msra.mxu0 %v1281
        %1371 = vmatprep.subr.bf16.mxu0 0
        %1372 = vmatpush1.bf16.msra.mxu0 %v1282
        %1373 = vmatprep.subr.bf16.mxu0 0
        %1374 = vmatpush1.bf16.msra.mxu0 %v1283
        %1375 = vmatprep.subr.bf16.mxu0 0
        %1376 = vmatpush1.bf16.msra.mxu0 %v1284
        %1377 = vmatprep.subr.bf16.mxu0 0
        %1378 = vmatpush1.bf16.msra.mxu0 %v1285
        %1379 = vmatprep.subr.bf16.mxu0 0
        %1380 = vmatpush1.bf16.msra.mxu0 %v1286
        %1381 = vmatprep.subr.bf16.mxu0 0
        %1382 = vmatpush1.bf16.msra.mxu0 %v1287
        %1383 = vmatprep.subr.bf16.mxu0 0
        %1384 = vmatpush1.bf16.msra.mxu0 %v1288
        %1385 = vmatprep.mubr.bf16.mxu0 %v1022
        %1386 = vmatmul.mubr.bf16.gmra.mrb[0].mxu0 %v1021
        %v1387 = vpop.f32.mrb[0].mxu0
        %v1388 = vadd.f32 %v1111, %v1387
        %v1389 = vpop.f32.mrb[0].mxu0
        %v1390 = vpop.f32.mrb[0].mxu0
        %v1391 = vpop.f32.mrb[0].mxu0
        %1392 = vdwg.mxu0
        %1393 = vmatprep.subr.bf16.mxu0 0
        %1394 = vmatpush1.bf16.msra.mxu0 %v1289
        %1395 = vmatprep.subr.bf16.mxu0 0
        %1396 = vmatpush1.bf16.msra.mxu0 %v1290
        %1397 = vmatprep.subr.bf16.mxu0 0
        %1398 = vmatpush1.bf16.msra.mxu0 %v1291
        %1399 = vmatprep.subr.bf16.mxu0 0
        %1400 = vmatpush1.bf16.msra.mxu0 %v1292
        %1401 = vmatprep.subr.bf16.mxu0 0
        %1402 = vmatpush1.bf16.msra.mxu0 %v1293
        %1403 = vmatprep.subr.bf16.mxu0 0
        %1404 = vmatpush1.bf16.msra.mxu0 %v1294
        %1405 = vmatprep.subr.bf16.mxu0 0
        %1406 = vmatpush1.bf16.msra.mxu0 %v1295
        %1407 = vmatprep.subr.bf16.mxu0 0
        %1408 = vmatpush1.bf16.msra.mxu0 %v1296
        %1409 = vmatprep.subr.bf16.mxu0 0
        %1410 = vmatpush1.bf16.msra.mxu0 %v1297
        %1411 = vmatprep.subr.bf16.mxu0 0
        %1412 = vmatpush1.bf16.msra.mxu0 %v1298
        %1413 = vmatprep.subr.bf16.mxu0 0
        %1414 = vmatpush1.bf16.msra.mxu0 %v1299
        %1415 = vmatprep.subr.bf16.mxu0 0
        %1416 = vmatpush1.bf16.msra.mxu0 %v1300
        %1417 = vmatprep.subr.bf16.mxu0 0
        %1418 = vmatpush1.bf16.msra.mxu0 %v1301
        %1419 = vmatprep.subr.bf16.mxu0 0
        %1420 = vmatpush1.bf16.msra.mxu0 %v1302
        %1421 = vmatprep.subr.bf16.mxu0 0
        %1422 = vmatpush1.bf16.msra.mxu0 %v1303
        %1423 = vmatprep.subr.bf16.mxu0 0
        %1424 = vmatpush1.bf16.msra.mxu0 %v1304
        %1425 = vmatprep.mubr.bf16.mxu0 %v1024
        %1426 = vmatmul.mubr.bf16.gmra.mrb[0].mxu0 %v1023
        %v1427 = vpop.f32.mrb[0].mxu0
        %v1428 = vadd.f32 %v1388, %v1427
        %v1429 = vpop.f32.mrb[0].mxu0
        %v1430 = vpop.f32.mrb[0].mxu0
        %v1431 = vpop.f32.mrb[0].mxu0
        %1432 = vdwg.mxu0
        %1433 = vmatprep.subr.bf16.mxu0 0
        %1434 = vmatpush1.bf16.msra.mxu0 %v1305
        %1435 = vmatprep.subr.bf16.mxu0 0
        %1436 = vmatpush1.bf16.msra.mxu0 %v1306
        %1437 = vmatprep.subr.bf16.mxu0 0
        %1438 = vmatpush1.bf16.msra.mxu0 %v1307
        %1439 = vmatprep.subr.bf16.mxu0 0
        %1440 = vmatpush1.bf16.msra.mxu0 %v1308
        %1441 = vmatprep.subr.bf16.mxu0 0
        %1442 = vmatpush1.bf16.msra.mxu0 %v1309
        %1443 = vmatprep.subr.bf16.mxu0 0
        %1444 = vmatpush1.bf16.msra.mxu0 %v1310
        %1445 = vmatprep.subr.bf16.mxu0 0
        %1446 = vmatpush1.bf16.msra.mxu0 %v1311
        %1447 = vmatprep.subr.bf16.mxu0 0
        %1448 = vmatpush1.bf16.msra.mxu0 %v1312
        %1449 = vmatprep.subr.bf16.mxu0 0
        %1450 = vmatpush1.bf16.msra.mxu0 0
        %1451 = vmatprep.subr.bf16.mxu0 0
        %1452 = vmatpush1.bf16.msra.mxu0 0
        %1453 = vmatprep.subr.bf16.mxu0 0
        %1454 = vmatpush1.bf16.msra.mxu0 0
        %1455 = vmatprep.subr.bf16.mxu0 0
        %1456 = vmatpush1.bf16.msra.mxu0 0
        %1457 = vmatprep.subr.bf16.mxu0 0
        %1458 = vmatpush1.bf16.msra.mxu0 0
        %1459 = vmatprep.subr.bf16.mxu0 0
        %1460 = vmatpush1.bf16.msra.mxu0 0
        %1461 = vmatprep.subr.bf16.mxu0 0
        %1462 = vmatpush1.bf16.msra.mxu0 0
        %1463 = vmatprep.subr.bf16.mxu0 0
        %1464 = vmatpush1.bf16.msra.mxu0 0
        %1465 = vmatprep.mubr.bf16.mxu0 0
        %1466 = vmatmul.mubr.bf16.gmra.mrb[0].mxu0 %v1025
        %v1467 = vpop.f32.mrb[0].mxu0
        %v1468 = vadd.f32 %v1428, %v1467
        %v1469 = vpop.f32.mrb[0].mxu0
        %v1470 = vpop.f32.mrb[0].mxu0
        %v1471 = vpop.f32.mrb[0].mxu0
        %1472 = vdwg.mxu0
        %v1473 = vmax.f32 %v1468, 0.0
        %v1474 = vadd.s32 %v516, 4294967288
        %vm1475 = vcmp.ge.s32.totalorder %v1474, 0
        %vm1476 = vcmp.lt.s32.totalorder %v1474, 8
        %vm1477 = vmand %vm1475, %vm1476
        %v1478 = vsel %vm1477, 1, 0
        %vm1479 = vcmp.eq.s32.totalorder %v1478, 1
        %v1480 = vsel %vm1479, %v1473, 0.0
        %v1481 = vrot.slane %v1473, 4
        %v1482 = vsel %vm1008, %v1481, 0.0
        %v1483 = vsel %vm1019, %v1481, 0.0
        %v1484 = vadd.s32 %v516, 8
        %vm1485 = vcmp.ge.s32.totalorder %v1484, 0
        %vm1486 = vcmp.lt.s32.totalorder %v1484, 8
        %vm1487 = vmand %vm1485, %vm1486
        %v1488 = vsel %vm1487, 1, 0
        %vm1489 = vcmp.eq.s32.totalorder %v1488, 1
        %v1490 = vsel %vm1489, %v1473, 0.0
        %v1491 = vpack.c.bf16 %v1480, %v1480
        %v1492 = vpack.c.bf16 %v1482, %v1482
        %v1493 = vpack.c.bf16 %v1473, %v1473
        %v1494 = vpack.c.bf16 %v1483, %v1483
        %v1495 = vpack.c.bf16 %v1490, %v1490
        %v1496 = vld [vmem:[#allocation7] sm:$0xf]
        %v1497 = vld [vmem:[#allocation7 + $0x4] sm:$0xf]
        %v1498 = vld [vmem:[#allocation7 + $0x8] sm:$0xf]
        %v1499 = vld [vmem:[#allocation7 + $0xc] sm:$0xf]
        %v1500 = vld [vmem:[#allocation7 + $0x10] sm:$0xf]
        %v1501 = vld [vmem:[#allocation7 + $0x14] sm:$0xf]
        %v1502 = vld [vmem:[#allocation7 + $0x18] sm:$0xf]
        %v1503 = vld [vmem:[#allocation7 + $0x1c] sm:$0xf]
        %v1504 = vld [vmem:[#allocation7 + $0x20] sm:$0xf]
        %v1505 = vld [vmem:[#allocation7 + $0x24] sm:$0xf]
        %v1506 = vld [vmem:[#allocation7 + $0x28] sm:$0xf]
        %v1507 = vld [vmem:[#allocation7 + $0x2c] sm:$0xf]
        %v1508 = vld [vmem:[#allocation7 + $0x30] sm:$0xf]
        %v1509 = vld [vmem:[#allocation7 + $0x34] sm:$0xf]
        %v1510 = vld [vmem:[#allocation7 + $0x38] sm:$0xf]
        %v1511 = vld [vmem:[#allocation7 + $0x3c] sm:$0xf]
        %v1512 = vld [vmem:[#allocation7 + $0x40] sm:$0xf]
        %v1513 = vld [vmem:[#allocation7 + $0x44] sm:$0xf]
        %v1514 = vld [vmem:[#allocation7 + $0x48] sm:$0xf]
        %v1515 = vld [vmem:[#allocation7 + $0x4c] sm:$0xf]
        %v1516 = vld [vmem:[#allocation7 + $0x50] sm:$0xf]
        %v1517 = vld [vmem:[#allocation7 + $0x54] sm:$0xf]
        %v1518 = vld [vmem:[#allocation7 + $0x58] sm:$0xf]
        %v1519 = vld [vmem:[#allocation7 + $0x5c] sm:$0xf]
        %v1520 = vld [vmem:[#allocation7 + $0x60] sm:$0xf]
        %v1521 = vld [vmem:[#allocation7 + $0x64] sm:$0xf]
        %v1522 = vld [vmem:[#allocation7 + $0x68] sm:$0xf]
        %v1523 = vld [vmem:[#allocation7 + $0x6c] sm:$0xf]
        %v1524 = vld [vmem:[#allocation7 + $0x70] sm:$0xf]
        %v1525 = vld [vmem:[#allocation7 + $0x74] sm:$0xf]
        %v1526 = vld [vmem:[#allocation7 + $0x78] sm:$0xf]
        %v1527 = vld [vmem:[#allocation7 + $0x7c] sm:$0xf]
        %v1528 = vld [vmem:[#allocation7 + $0x80] sm:$0xf]
        %v1529 = vld [vmem:[#allocation7 + $0x84] sm:$0xf]
        %v1530 = vld [vmem:[#allocation7 + $0x88] sm:$0xf]
        %v1531 = vld [vmem:[#allocation7 + $0x8c] sm:$0xf]
        %v1532 = vld [vmem:[#allocation7 + $0x90] sm:$0xf]
        %v1533 = vld [vmem:[#allocation7 + $0x94] sm:$0xf]
        %v1534 = vld [vmem:[#allocation7 + $0x98] sm:$0xf]
        %v1535 = vld [vmem:[#allocation7 + $0x9c] sm:$0xf]
        %v1536 = vld [vmem:[#allocation7 + $0xa0] sm:$0xf]
        %v1537 = vld [vmem:[#allocation7 + $0xa4] sm:$0xf]
        %v1538 = vld [vmem:[#allocation7 + $0xa8] sm:$0xf]
        %v1539 = vld [vmem:[#allocation7 + $0xac] sm:$0xf]
        %v1540 = vld [vmem:[#allocation7 + $0xb0] sm:$0xf]
        %v1541 = vld [vmem:[#allocation7 + $0xb4] sm:$0xf]
        %v1542 = vld [vmem:[#allocation7 + $0xb8] sm:$0xf]
        %v1543 = vld [vmem:[#allocation7 + $0xbc] sm:$0xf]
        %v1544 = vld [vmem:[#allocation7 + $0xc0] sm:$0xf]
        %v1545 = vld [vmem:[#allocation7 + $0xc4] sm:$0xf]
        %v1546 = vld [vmem:[#allocation7 + $0xc8] sm:$0xf]
        %v1547 = vld [vmem:[#allocation7 + $0xcc] sm:$0xf]
        %v1548 = vld [vmem:[#allocation7 + $0xd0] sm:$0xf]
        %v1549 = vld [vmem:[#allocation7 + $0xd4] sm:$0xf]
        %v1550 = vld [vmem:[#allocation7 + $0xd8] sm:$0xf]
        %v1551 = vld [vmem:[#allocation7 + $0xdc] sm:$0xf]
        %v1552 = vld [vmem:[#allocation7 + $0xe0] sm:$0xf]
        %v1553 = vld [vmem:[#allocation7 + $0xe4] sm:$0xf]
        %v1554 = vld [vmem:[#allocation7 + $0xe8] sm:$0xf]
        %v1555 = vld [vmem:[#allocation7 + $0xec] sm:$0xf]
        %v1556 = vld [vmem:[#allocation7 + $0xf0] sm:$0xf]
        %v1557 = vld [vmem:[#allocation7 + $0xf4] sm:$0xf]
        %v1558 = vld [vmem:[#allocation7 + $0xf8] sm:$0xf]
        %v1559 = vld [vmem:[#allocation7 + $0xfc] sm:$0xf]
        %v1560 = vld [vmem:[#allocation7 + $0x100] sm:$0xf]
        %v1561 = vld [vmem:[#allocation7 + $0x104] sm:$0xf]
        %v1562 = vld [vmem:[#allocation7 + $0x108] sm:$0xf]
        %v1563 = vld [vmem:[#allocation7 + $0x10c] sm:$0xf]
        %v1564 = vld [vmem:[#allocation7 + $0x110] sm:$0xf]
        %v1565 = vld [vmem:[#allocation7 + $0x114] sm:$0xf]
        %v1566 = vld [vmem:[#allocation7 + $0x118] sm:$0xf]
        %v1567 = vld [vmem:[#allocation7 + $0x11c] sm:$0xf]
        %v1568 = vld [vmem:[#allocation7 + $0x120] sm:$0xf]
        %v1569 = vld [vmem:[#allocation7 + $0x124] sm:$0xf]
        %v1570 = vld [vmem:[#allocation7 + $0x128] sm:$0xf]
        %v1571 = vld [vmem:[#allocation7 + $0x12c] sm:$0xf]
        %v1572 = vld [vmem:[#allocation7 + $0x130] sm:$0xf]
        %v1573 = vld [vmem:[#allocation7 + $0x134] sm:$0xf]
        %v1574 = vld [vmem:[#allocation7 + $0x138] sm:$0xf]
        %v1575 = vld [vmem:[#allocation7 + $0x13c] sm:$0xf]
        %v1576 = vld [vmem:[%s8] sm:$0x1]
        %v1578 = vlaneseq
        %v1579 = vshrl.u32 %v1578, 7
        %v1580 = vsub.s32 0, %v1579
        %v1581 = vrot.slane %v1576, %v1580
        %v1663 = vunpack.c.l.b16 %v1496
        %v1664 = vunpack.c.l.b16 %v1497
        %v1665 = vunpack.c.l.b16 %v1498
        %v1666 = vunpack.c.l.b16 %v1499
        %v1667 = vunpack.c.l.b16 %v1500
        %v1668 = vunpack.c.l.b16 %v1501
        %v1669 = vunpack.c.l.b16 %v1502
        %v1670 = vunpack.c.l.b16 %v1503
        %v1671 = vunpack.c.l.b16 %v1504
        %v1672 = vunpack.c.l.b16 %v1505
        %v1673 = vunpack.c.l.b16 %v1506
        %v1674 = vunpack.c.l.b16 %v1507
        %v1675 = vunpack.c.l.b16 %v1508
        %v1676 = vunpack.c.l.b16 %v1509
        %v1677 = vunpack.c.l.b16 %v1510
        %v1678 = vunpack.c.l.b16 %v1511
        %v1679 = vunpack.c.l.b16 %v1512
        %v1680 = vunpack.c.l.b16 %v1513
        %v1681 = vunpack.c.l.b16 %v1514
        %v1682 = vunpack.c.l.b16 %v1515
        %v1683 = vunpack.c.l.b16 %v1516
        %v1684 = vunpack.c.l.b16 %v1517
        %v1685 = vunpack.c.l.b16 %v1518
        %v1686 = vunpack.c.l.b16 %v1519
        %v1687 = vunpack.c.l.b16 %v1520
        %v1688 = vunpack.c.l.b16 %v1521
        %v1689 = vunpack.c.l.b16 %v1522
        %v1690 = vunpack.c.l.b16 %v1523
        %v1691 = vunpack.c.l.b16 %v1524
        %v1692 = vunpack.c.l.b16 %v1525
        %v1693 = vunpack.c.l.b16 %v1526
        %v1694 = vunpack.c.l.b16 %v1527
        %v1695 = vunpack.c.l.b16 %v1528
        %v1696 = vunpack.c.l.b16 %v1529
        %v1697 = vunpack.c.l.b16 %v1530
        %v1698 = vunpack.c.l.b16 %v1531
        %v1699 = vunpack.c.l.b16 %v1532
        %v1700 = vunpack.c.l.b16 %v1533
        %v1701 = vunpack.c.l.b16 %v1534
        %v1702 = vunpack.c.l.b16 %v1535
        %v1703 = vunpack.c.l.b16 %v1536
        %v1704 = vunpack.c.l.b16 %v1537
        %v1705 = vunpack.c.l.b16 %v1538
        %v1706 = vunpack.c.l.b16 %v1539
        %v1707 = vunpack.c.l.b16 %v1540
        %v1708 = vunpack.c.l.b16 %v1541
        %v1709 = vunpack.c.l.b16 %v1542
        %v1710 = vunpack.c.l.b16 %v1543
        %v1711 = vunpack.c.l.b16 %v1544
        %v1712 = vunpack.c.l.b16 %v1545
        %v1713 = vunpack.c.l.b16 %v1546
        %v1714 = vunpack.c.l.b16 %v1547
        %v1715 = vunpack.c.l.b16 %v1548
        %v1716 = vunpack.c.l.b16 %v1549
        %v1717 = vunpack.c.l.b16 %v1550
        %v1718 = vunpack.c.l.b16 %v1551
        %v1719 = vunpack.c.l.b16 %v1552
        %v1720 = vunpack.c.l.b16 %v1553
        %v1721 = vunpack.c.l.b16 %v1554
        %v1722 = vunpack.c.l.b16 %v1555
        %v1723 = vunpack.c.l.b16 %v1556
        %v1724 = vunpack.c.l.b16 %v1557
        %v1725 = vunpack.c.l.b16 %v1558
        %v1726 = vunpack.c.l.b16 %v1559
        %v1727 = vunpack.c.l.b16 %v1560
        %v1728 = vunpack.c.l.b16 %v1561
        %v1729 = vunpack.c.l.b16 %v1562
        %v1730 = vunpack.c.l.b16 %v1563
        %v1731 = vunpack.c.l.b16 %v1564
        %v1732 = vunpack.c.l.b16 %v1565
        %v1733 = vunpack.c.l.b16 %v1566
        %v1734 = vunpack.c.l.b16 %v1567
        %v1735 = vunpack.c.l.b16 %v1568
        %v1736 = vunpack.c.l.b16 %v1569
        %v1737 = vunpack.c.l.b16 %v1570
        %v1738 = vunpack.c.l.b16 %v1571
        %v1739 = vunpack.c.l.b16 %v1572
        %v1740 = vunpack.c.l.b16 %v1573
        %v1741 = vunpack.c.l.b16 %v1574
        %v1742 = vunpack.c.l.b16 %v1575
        %v1743 = vpack.c.b16 %v1664, %v1663
        %v1744 = vpack.c.b16 %v1666, %v1665
        %v1745 = vpack.c.b16 %v1668, %v1667
        %v1746 = vpack.c.b16 %v1670, %v1669
        %v1747 = vpack.c.b16 %v1672, %v1671
        %v1748 = vpack.c.b16 %v1674, %v1673
        %v1749 = vpack.c.b16 %v1676, %v1675
        %v1750 = vpack.c.b16 %v1678, %v1677
        %v1751 = vpack.c.b16 %v1680, %v1679
        %v1752 = vpack.c.b16 %v1682, %v1681
        %v1753 = vpack.c.b16 %v1684, %v1683
        %v1754 = vpack.c.b16 %v1686, %v1685
        %v1755 = vpack.c.b16 %v1688, %v1687
        %v1756 = vpack.c.b16 %v1690, %v1689
        %v1757 = vpack.c.b16 %v1692, %v1691
        %v1758 = vpack.c.b16 %v1694, %v1693
        %v1759 = vpack.c.b16 %v1696, %v1695
        %v1760 = vpack.c.b16 %v1698, %v1697
        %v1761 = vpack.c.b16 %v1700, %v1699
        %v1762 = vpack.c.b16 %v1702, %v1701
        %v1763 = vpack.c.b16 %v1704, %v1703
        %v1764 = vpack.c.b16 %v1706, %v1705
        %v1765 = vpack.c.b16 %v1708, %v1707
        %v1766 = vpack.c.b16 %v1710, %v1709
        %v1767 = vpack.c.b16 %v1712, %v1711
        %v1768 = vpack.c.b16 %v1714, %v1713
        %v1769 = vpack.c.b16 %v1716, %v1715
        %v1770 = vpack.c.b16 %v1718, %v1717
        %v1771 = vpack.c.b16 %v1720, %v1719
        %v1772 = vpack.c.b16 %v1722, %v1721
        %v1773 = vpack.c.b16 %v1724, %v1723
        %v1774 = vpack.c.b16 %v1726, %v1725
        %v1775 = vpack.c.b16 %v1728, %v1727
        %v1776 = vpack.c.b16 %v1730, %v1729
        %v1777 = vpack.c.b16 %v1732, %v1731
        %v1778 = vpack.c.b16 %v1734, %v1733
        %v1779 = vpack.c.b16 %v1736, %v1735
        %v1780 = vpack.c.b16 %v1738, %v1737
        %v1781 = vpack.c.b16 %v1740, %v1739
        %v1782 = vpack.c.b16 %v1742, %v1741
        %1823 = vmatprep.subr.bf16.mxu0 0
        %1824 = vmatpush1.bf16.msra.mxu0 %v1743
        %1825 = vmatprep.subr.bf16.mxu0 0
        %1826 = vmatpush1.bf16.msra.mxu0 %v1744
        %1827 = vmatprep.subr.bf16.mxu0 0
        %1828 = vmatpush1.bf16.msra.mxu0 %v1745
        %1829 = vmatprep.subr.bf16.mxu0 0
        %1830 = vmatpush1.bf16.msra.mxu0 %v1746
        %1831 = vmatprep.subr.bf16.mxu0 0
        %1832 = vmatpush1.bf16.msra.mxu0 %v1747
        %1833 = vmatprep.subr.bf16.mxu0 0
        %1834 = vmatpush1.bf16.msra.mxu0 %v1748
        %1835 = vmatprep.subr.bf16.mxu0 0
        %1836 = vmatpush1.bf16.msra.mxu0 %v1749
        %1837 = vmatprep.subr.bf16.mxu0 0
        %1838 = vmatpush1.bf16.msra.mxu0 %v1750
        %1839 = vmatprep.subr.bf16.mxu0 0
        %1840 = vmatpush1.bf16.msra.mxu0 %v1751
        %1841 = vmatprep.subr.bf16.mxu0 0
        %1842 = vmatpush1.bf16.msra.mxu0 %v1752
        %1843 = vmatprep.subr.bf16.mxu0 0
        %1844 = vmatpush1.bf16.msra.mxu0 %v1753
        %1845 = vmatprep.subr.bf16.mxu0 0
        %1846 = vmatpush1.bf16.msra.mxu0 %v1754
        %1847 = vmatprep.subr.bf16.mxu0 0
        %1848 = vmatpush1.bf16.msra.mxu0 %v1755
        %1849 = vmatprep.subr.bf16.mxu0 0
        %1850 = vmatpush1.bf16.msra.mxu0 %v1756
        %1851 = vmatprep.subr.bf16.mxu0 0
        %1852 = vmatpush1.bf16.msra.mxu0 %v1757
        %1853 = vmatprep.subr.bf16.mxu0 0
        %1854 = vmatpush1.bf16.msra.mxu0 %v1758
        %1855 = vmatprep.mubr.bf16.mxu0 %v1492
        %1856 = vmatmul.mubr.bf16.gmra.mrb[0].mxu0 %v1491
        %v1857 = vpop.f32.mrb[0].mxu0
        %v1858 = vadd.f32 %v1581, %v1857
        %v1859 = vpop.f32.mrb[0].mxu0
        %v1860 = vpop.f32.mrb[0].mxu0
        %v1861 = vpop.f32.mrb[0].mxu0
        %1862 = vdwg.mxu0
        %1863 = vmatprep.subr.bf16.mxu0 0
        %1864 = vmatpush1.bf16.msra.mxu0 %v1759
        %1865 = vmatprep.subr.bf16.mxu0 0
        %1866 = vmatpush1.bf16.msra.mxu0 %v1760
        %1867 = vmatprep.subr.bf16.mxu0 0
        %1868 = vmatpush1.bf16.msra.mxu0 %v1761
        %1869 = vmatprep.subr.bf16.mxu0 0
        %1870 = vmatpush1.bf16.msra.mxu0 %v1762
        %1871 = vmatprep.subr.bf16.mxu0 0
        %1872 = vmatpush1.bf16.msra.mxu0 %v1763
        %1873 = vmatprep.subr.bf16.mxu0 0
        %1874 = vmatpush1.bf16.msra.mxu0 %v1764
        %1875 = vmatprep.subr.bf16.mxu0 0
        %1876 = vmatpush1.bf16.msra.mxu0 %v1765
        %1877 = vmatprep.subr.bf16.mxu0 0
        %1878 = vmatpush1.bf16.msra.mxu0 %v1766
        %1879 = vmatprep.subr.bf16.mxu0 0
        %1880 = vmatpush1.bf16.msra.mxu0 %v1767
        %1881 = vmatprep.subr.bf16.mxu0 0
        %1882 = vmatpush1.bf16.msra.mxu0 %v1768
        %1883 = vmatprep.subr.bf16.mxu0 0
        %1884 = vmatpush1.bf16.msra.mxu0 %v1769
        %1885 = vmatprep.subr.bf16.mxu0 0
        %1886 = vmatpush1.bf16.msra.mxu0 %v1770
        %1887 = vmatprep.subr.bf16.mxu0 0
        %1888 = vmatpush1.bf16.msra.mxu0 %v1771
        %1889 = vmatprep.subr.bf16.mxu0 0
        %1890 = vmatpush1.bf16.msra.mxu0 %v1772
        %1891 = vmatprep.subr.bf16.mxu0 0
        %1892 = vmatpush1.bf16.msra.mxu0 %v1773
        %1893 = vmatprep.subr.bf16.mxu0 0
        %1894 = vmatpush1.bf16.msra.mxu0 %v1774
        %1895 = vmatprep.mubr.bf16.mxu0 %v1494
        %1896 = vmatmul.mubr.bf16.gmra.mrb[0].mxu0 %v1493
        %v1897 = vpop.f32.mrb[0].mxu0
        %v1898 = vadd.f32 %v1858, %v1897
        %v1899 = vpop.f32.mrb[0].mxu0
        %v1900 = vpop.f32.mrb[0].mxu0
        %v1901 = vpop.f32.mrb[0].mxu0
        %1902 = vdwg.mxu0
        %1903 = vmatprep.subr.bf16.mxu0 0
        %1904 = vmatpush1.bf16.msra.mxu0 %v1775
        %1905 = vmatprep.subr.bf16.mxu0 0
        %1906 = vmatpush1.bf16.msra.mxu0 %v1776
        %1907 = vmatprep.subr.bf16.mxu0 0
        %1908 = vmatpush1.bf16.msra.mxu0 %v1777
        %1909 = vmatprep.subr.bf16.mxu0 0
        %1910 = vmatpush1.bf16.msra.mxu0 %v1778
        %1911 = vmatprep.subr.bf16.mxu0 0
        %1912 = vmatpush1.bf16.msra.mxu0 %v1779
        %1913 = vmatprep.subr.bf16.mxu0 0
        %1914 = vmatpush1.bf16.msra.mxu0 %v1780
        %1915 = vmatprep.subr.bf16.mxu0 0
        %1916 = vmatpush1.bf16.msra.mxu0 %v1781
        %1917 = vmatprep.subr.bf16.mxu0 0
        %1918 = vmatpush1.bf16.msra.mxu0 %v1782
        %1919 = vmatprep.subr.bf16.mxu0 0
        %1920 = vmatpush1.bf16.msra.mxu0 0
        %1921 = vmatprep.subr.bf16.mxu0 0
        %1922 = vmatpush1.bf16.msra.mxu0 0
        %1923 = vmatprep.subr.bf16.mxu0 0
        %1924 = vmatpush1.bf16.msra.mxu0 0
        %1925 = vmatprep.subr.bf16.mxu0 0
        %1926 = vmatpush1.bf16.msra.mxu0 0
        %1927 = vmatprep.subr.bf16.mxu0 0
        %1928 = vmatpush1.bf16.msra.mxu0 0
        %1929 = vmatprep.subr.bf16.mxu0 0
        %1930 = vmatpush1.bf16.msra.mxu0 0
        %1931 = vmatprep.subr.bf16.mxu0 0
        %1932 = vmatpush1.bf16.msra.mxu0 0
        %1933 = vmatprep.subr.bf16.mxu0 0
        %1934 = vmatpush1.bf16.msra.mxu0 0
        %1935 = vmatprep.mubr.bf16.mxu0 0
        %1936 = vmatmul.mubr.bf16.gmra.mrb[0].mxu0 %v1495
        %v1937 = vpop.f32.mrb[0].mxu0
        %v1938 = vadd.f32 %v1898, %v1937
        %v1939 = vpop.f32.mrb[0].mxu0
        %v1940 = vpop.f32.mrb[0].mxu0
        %v1941 = vpop.f32.mrb[0].mxu0
        %1942 = vdwg.mxu0
        %v1943 = vmax.f32 %v1938, 0.0
        %v1944 = vpack.c.bf16 %v1943, %v1943
        %v1945 = vld [vmem:[#allocation8] sm:$0xf]
        %v1946 = vld [vmem:[#allocation8 + $0x4] sm:$0xf]
        %v1947 = vld [vmem:[#allocation8 + $0x8] sm:$0xf]
        %v1948 = vld [vmem:[#allocation8 + $0xc] sm:$0xf]
        %v1949 = vld [vmem:[#allocation8 + $0x10] sm:$0xf]
        %v1950 = vld [vmem:[#allocation8 + $0x14] sm:$0xf]
        %v1951 = vld [vmem:[#allocation8 + $0x18] sm:$0xf]
        %v1952 = vld [vmem:[#allocation8 + $0x1c] sm:$0xf]
        %v1953 = vld [vmem:[#allocation8 + $0x20] sm:$0xf]
        %v1954 = vld [vmem:[#allocation8 + $0x24] sm:$0xf]
        %v1955 = vld [vmem:[#allocation8 + $0x28] sm:$0xf]
        %v1956 = vld [vmem:[#allocation8 + $0x2c] sm:$0xf]
        %v1957 = vld [vmem:[#allocation8 + $0x30] sm:$0xf]
        %v1958 = vld [vmem:[#allocation8 + $0x34] sm:$0xf]
        %v1959 = vld [vmem:[#allocation8 + $0x38] sm:$0xf]
        %v1960 = vld [vmem:[#allocation8 + $0x3c] sm:$0xf]
        %v1961 = vld [vmem:[%s10] sm:$0x1]
        %v1963 = vlaneseq
        %v1964 = vshrl.u32 %v1963, 7
        %v1965 = vsub.s32 0, %v1964
        %v1966 = vrot.slane %v1961, %v1965
        %v1984 = vunpack.c.l.b16 %v1945
        %v1985 = vunpack.c.l.b16 %v1946
        %v1986 = vunpack.c.l.b16 %v1947
        %v1987 = vunpack.c.l.b16 %v1948
        %v1988 = vunpack.c.l.b16 %v1949
        %v1989 = vunpack.c.l.b16 %v1950
        %v1990 = vunpack.c.l.b16 %v1951
        %v1991 = vunpack.c.l.b16 %v1952
        %v1992 = vunpack.c.l.b16 %v1953
        %v1993 = vunpack.c.l.b16 %v1954
        %v1994 = vunpack.c.l.b16 %v1955
        %v1995 = vunpack.c.l.b16 %v1956
        %v1996 = vunpack.c.l.b16 %v1957
        %v1997 = vunpack.c.l.b16 %v1958
        %v1998 = vunpack.c.l.b16 %v1959
        %v1999 = vunpack.c.l.b16 %v1960
        %v2000 = vpack.c.b16 %v1985, %v1984
        %v2001 = vpack.c.b16 %v1987, %v1986
        %v2002 = vpack.c.b16 %v1989, %v1988
        %v2003 = vpack.c.b16 %v1991, %v1990
        %v2004 = vpack.c.b16 %v1993, %v1992
        %v2005 = vpack.c.b16 %v1995, %v1994
        %v2006 = vpack.c.b16 %v1997, %v1996
        %v2007 = vpack.c.b16 %v1999, %v1998
        %2016 = vmatprep.subr.bf16.mxu0 0
        %2017 = vmatpush1.bf16.msra.mxu0 %v2000
        %2018 = vmatprep.subr.bf16.mxu0 0
        %2019 = vmatpush1.bf16.msra.mxu0 %v2001
        %2020 = vmatprep.subr.bf16.mxu0 0
        %2021 = vmatpush1.bf16.msra.mxu0 %v2002
        %2022 = vmatprep.subr.bf16.mxu0 0
        %2023 = vmatpush1.bf16.msra.mxu0 %v2003
        %2024 = vmatprep.subr.bf16.mxu0 0
        %2025 = vmatpush1.bf16.msra.mxu0 %v2004
        %2026 = vmatprep.subr.bf16.mxu0 0
        %2027 = vmatpush1.bf16.msra.mxu0 %v2005
        %2028 = vmatprep.subr.bf16.mxu0 0
        %2029 = vmatpush1.bf16.msra.mxu0 %v2006
        %2030 = vmatprep.subr.bf16.mxu0 0
        %2031 = vmatpush1.bf16.msra.mxu0 %v2007
        %2032 = vmatprep.subr.bf16.mxu0 0
        %2033 = vmatpush1.bf16.msra.mxu0 0
        %2034 = vmatprep.subr.bf16.mxu0 0
        %2035 = vmatpush1.bf16.msra.mxu0 0
        %2036 = vmatprep.subr.bf16.mxu0 0
        %2037 = vmatpush1.bf16.msra.mxu0 0
        %2038 = vmatprep.subr.bf16.mxu0 0
        %2039 = vmatpush1.bf16.msra.mxu0 0
        %2040 = vmatprep.subr.bf16.mxu0 0
        %2041 = vmatpush1.bf16.msra.mxu0 0
        %2042 = vmatprep.subr.bf16.mxu0 0
        %2043 = vmatpush1.bf16.msra.mxu0 0
        %2044 = vmatprep.subr.bf16.mxu0 0
        %2045 = vmatpush1.bf16.msra.mxu0 0
        %2046 = vmatprep.subr.bf16.mxu0 0
        %2047 = vmatpush1.bf16.msra.mxu0 0
        %2048 = vmatprep.mubr.bf16.mxu0 0
        %2049 = vmatmul.mubr.bf16.gmra.mrb[0].mxu0 %v1944
        %v2050 = vpop.f32.mrb[0].mxu0
        %v2051 = vadd.f32 %v1966, %v2050
        %v2052 = vpop.f32.mrb[0].mxu0
        %v2053 = vpop.f32.mrb[0].mxu0
        %v2054 = vpop.f32.mrb[0].mxu0
        %2055 = vdwg.mxu0
        %2056 = vst [vmem:[%s436] sm:$0xff] %v2051
        %s2057 = sand.u32 %s272, 1
        %s2058 = scalar_lea.sflag [#allocation4], %s2057
        %s2059 = sand.u32 %s272, 1
        %s2060 = smul.addr %s2059, 8
        %s2061 = scalar_lea.vmem [#allocation10], %s2060
        // Predicated region
        $region81: #{tpu_custom_call.1} parent=63 // pred_check
          %p2062 = pneg %p282
        $region82: #{tpu_custom_call.1} parent=63 // pred_check_branch
          %2064 = sbr.rel (%p2062) target = $region84
        $region83: #{tpu_custom_call.1} parent=63 // pred_region
          %s2066 = ssub.s32 128, 128
          %2067 = vsyncadd %s2058, %s2066
          %s2068 = smul.addr %s28, 128
          %s2069 = scalar_lea.hbm %s11, %s2068
          %s2071 = sshll.u32 %s2061, 4
          %s2072 = int_to_ptr.vmem [resolvable:$true] %s2071
          %2074 = dma.vmem_to_hbm [thread:$0]  %s2072, 128, %s2069, %s2058
        $region84: #{tpu_custom_call.1} parent=63 // pred_fallthru
          _
      $region64: #{tpu_custom_call.1} parent=5 // pred_fallthru
        _
      %p2075 = scmp.le.s32.totalorder 2, %s23
      // Predicated region
      $region85: #{tpu_custom_call.1} parent=5 // pred_check
        %p2076 = pneg %p2075
      $region86: #{tpu_custom_call.1} parent=5 // pred_check_branch
        %2078 = sbr.rel (%p2076) target = $region88
      $region87: #{tpu_custom_call.1} parent=5 // pred_region
        %s2079 = ssub.s32 %s23, 2
        // Predicated region
        $region89: #{tpu_custom_call.1} parent=87 // pred_check
          %p2080 = pneg %p288
        $region90: #{tpu_custom_call.1} parent=87 // pred_check_branch
          %2082 = sbr.rel (%p2080) target = $region92
        $region91: #{tpu_custom_call.1} parent=87 // pred_region
          %s2083 = sand.u32 %s273, 1
          %s2084 = scalar_lea.sflag [#allocation4], %s2083
          %s2085 = sand.u32 %s273, 1
          %s2086 = smul.addr %s2085, 8
          %s2087 = scalar_lea.vmem [#allocation10], %s2086
          %2088 = dma.done %s2084, 128
        $region92: #{tpu_custom_call.1} parent=87 // pred_fallthru
          _
      $region88: #{tpu_custom_call.1} parent=5 // pred_fallthru
        _
    $region6: #{tpu_custom_call.1} parent=1 // loop_footer
      %s27 = sadd.s32 1, %s23
    $region7: #{tpu_custom_call.1} parent=1 // loop_footer_branch
      %22 = sbr.rel target = $region3
    $region8: #{tpu_custom_call.1} parent=1 // loop_exit
      _
    %2089 = vsyncpa [#allocation3], 1
    %s2090 = scalar_lea.sflag [#allocation3], 1
    %2091 = vsyncpa %s2090, 1
    %2092 = vsyncpa [#allocation6], 1
    %2093 = vsyncpa [#allocation9], 1
    %2094 = vsyncpa [#allocation4], 1
    %s2095 = scalar_lea.sflag [#allocation4], 1
    %2096 = vsyncpa %s2095, 1

</llo_original>
